<compile_context>
chip_gen: v7x
topology: tpu7x:2x2x1
jax: 0.10.0
libtpu: 0.0.40
codegen_flags: <defaults>
</compile_context>

<pallas_src>
import math

import jax
import jax.numpy as jnp
from jax.experimental import pallas as pl
from jax.experimental.pallas import tpu as pltpu


def _round_up(x: int, m: int) -> int:
    return (x + m - 1) // m * m


def _make_pair_encoder_kernel(num_layers: int):
    """Fused shared-MLP encoder applied to both views of one batch tile.

    Ref order: x0, x1, (W0, b0), ..., (Wk, bk), out
      x0/x1 : (TB, F)      bf16
      Wi    : (ci, ci+1)   bf16   (stored (in, out), so h @ W == x @ W.T in torch)
      bi    : (1, ci+1)    f32
      out   : (TB, 2*E)    out[:, :E] = enc(x0), out[:, E:] = enc(x1)
    """

    def kernel(*refs):
        x0_ref, x1_ref = refs[0], refs[1]
        out_ref = refs[-1]
        latent = out_ref.shape[-1] // 2

        h0 = x0_ref[...]
        h1 = x1_ref[...]
        for i in range(num_layers):
            w = refs[2 + 2 * i][...]          # bf16 (in, out) -> MXU operand
            b = refs[3 + 2 * i][...]          # f32  (1, out)  -> broadcasts
            a0 = jnp.dot(h0, w, preferred_element_type=jnp.float32) + b
            a1 = jnp.dot(h1, w, preferred_element_type=jnp.float32) + b
            a0 = jnp.maximum(a0, 0.0)         # Linear+ReLU layer_factory
            a1 = jnp.maximum(a1, 0.0)
            h0 = a0.astype(w.dtype)           # back to bf16 for next MXU pass
            h1 = a1.astype(w.dtype)

        # 128-aligned lane slices -> unmasked stores (E is a multiple of 128).
        out_ref[:, :latent] = h0.astype(out_ref.dtype)
        out_ref[:, latent:] = h1.astype(out_ref.dtype)

    return kernel


def init_encoder_params(key, channels, dtype=jnp.bfloat16):
    """PyTorch-Linear-style init.  channels = [F, h1, ..., E].

    Returns [(W, b), ...] with W: (in, out) in `dtype`, b: (1, out) f32.
    All channel widths should be multiples of 128 for lane-dense MXU operands.
    """
    params = []
    for in_c, out_c in zip(channels[:-1], channels[1:]):
        key, kw, kb = jax.random.split(key, 3)
        bound = 1.0 / float(in_c) ** 0.5
        w = jax.random.uniform(kw, (in_c, out_c), jnp.float32, -bound, bound)
        b = jax.random.uniform(kb, (1, out_c), jnp.float32, -bound, bound)
        params.append((w.astype(dtype), b))
    return params


def nonequivariant_view_pair_encoder(x, params, *, tile_b=None):
    """Forward pass.

    x      : (B, 2, *view_shape) — pair of views per example.
    params : [(W, b), ...] shared encoder MLP parameters.
    Returns (B, 2*E): concat([encoder(x[:,0]), encoder(x[:,1])], axis=1).
    """
    assert x.ndim >= 3 and x.shape[1] == 2, x.shape
    B = x.shape[0]
    F = math.prod(x.shape[2:])

    num_layers = len(params)
    latent = params[-1][0].shape[1]
    compute_dtype = params[0][0].dtype
    assert params[0][0].shape[0] == F, (params[0][0].shape, F)

    # Flatten each view (the encoder's Flatten stage) — done by XLA outside
    # the kernel, it is pure layout plumbing.
    x0 = x[:, 0].reshape(B, F)
    x1 = x[:, 1].reshape(B, F)

    # Batch tile: multiple of 16 (bf16 sublane packing), capped at 256 rows.
    if tile_b is None:
        tile_b = min(256, _round_up(B, 16))
    b_pad = _round_up(B, tile_b)
    if b_pad != B:
        pad = b_pad - B
        x0 = jnp.pad(x0, ((0, pad), (0, 0)))
        x1 = jnp.pad(x1, ((0, pad), (0, 0)))

    # bf16 operands into the MXU; accumulation stays f32 inside the kernel.
    x0 = x0.astype(compute_dtype)
    x1 = x1.astype(compute_dtype)

    params_flat = [t for wb in params for t in wb]

    grid = (b_pad // tile_b,)
    in_specs = [
        pl.BlockSpec((tile_b, F), lambda i: (i, 0)),   # x0 tile
        pl.BlockSpec((tile_b, F), lambda i: (i, 0)),   # x1 tile
    ]
    for w, b in params:                                # weights: VMEM-resident
        in_specs.append(pl.BlockSpec(w.shape, lambda i: (0, 0)))
        in_specs.append(pl.BlockSpec(b.shape, lambda i: (0, 0)))
    out_specs = pl.BlockSpec((tile_b, 2 * latent), lambda i: (i, 0))

    dims = [F] + [w.shape[1] for w, _ in params]
    flops = 2 * 2 * b_pad * sum(a * b for a, b in zip(dims[:-1], dims[1:]))
    bytes_accessed = (
        (x0.size + x1.size) * jnp.dtype(compute_dtype).itemsize
        + sum(t.size * t.dtype.itemsize for t in params_flat)
        + b_pad * 2 * latent * jnp.dtype(compute_dtype).itemsize
    )

    out = pl.pallas_call(
        _make_pair_encoder_kernel(num_layers),
        out_shape=jax.ShapeDtypeStruct((b_pad, 2 * latent), compute_dtype),
        grid=grid,
        in_specs=in_specs,
        out_specs=out_specs,
        compiler_params=pltpu.CompilerParams(
            dimension_semantics=("parallel",),   # split batch tiles across TCs
        ),
        cost_estimate=pl.CostEstimate(
            flops=flops, transcendentals=0, bytes_accessed=bytes_accessed),
    )(x0, x1, *params_flat)

    return out[:B]


def reference_forward(x, params):
    """Pure-JAX reference (same bf16-operand / f32-accumulate recipe)."""
    B = x.shape[0]
    F = math.prod(x.shape[2:])
    dtype = params[0][0].dtype

    def enc(v):
        h = v.reshape(B, F).astype(dtype)
        for w, b in params:
            a = jnp.dot(h, w, preferred_element_type=jnp.float32) + b
            h = jnp.maximum(a, 0.0).astype(w.dtype)
        return h

    return jnp.concatenate([enc(x[:, 0]), enc(x[:, 1])], axis=1)


if __name__ == "__main__":
    key = jax.random.PRNGKey(0)
    kx, kp = jax.random.split(key)

    # Small but lane-dense shapes: batch=2, 2 views, channels=4, spatial=8^3.
    B, C, S = 2, 4, 8
    F = C * S * S * S                    # 2048  (multiple of 128)
    channels = [F, 256, 128]             # encoder MLP: 2048 -> 256 -> 128

    x = jax.random.normal(kx, (B, 2, C, S, S, S), jnp.float32)
    params = init_encoder_params(kp, channels)

    out = nonequivariant_view_pair_encoder(x, params)
    out = jax.block_until_ready(out)

    ref = reference_forward(x, params)
    assert out.shape == (B, 2 * channels[-1]), out.shape
    err = jnp.max(jnp.abs(out.astype(jnp.float32) - ref.astype(jnp.float32)))
    assert err < 5e-2, f"max abs err = {err}"

    print("KERNEL_OK")
</pallas_src>

<mosaic_0001>
module attributes {stable_mosaic.version = 11 : i64} {
  func.func @kernel(%arg0: i32, %arg1: memref<16x2048xbf16, #tpu.memory_space<vmem>>, %arg2: memref<16x2048xbf16, #tpu.memory_space<vmem>>, %arg3: memref<2048x256xbf16, #tpu.memory_space<vmem>>, %arg4: memref<1x256xf32, #tpu.memory_space<vmem>>, %arg5: memref<256x128xbf16, #tpu.memory_space<vmem>>, %arg6: memref<1x128xf32, #tpu.memory_space<vmem>>, %arg7: memref<16x256xbf16, #tpu.memory_space<vmem>>) attributes {dimension_semantics = [#tpu.dimension_semantics<parallel>], iteration_bounds = array<i64: 1>, scalar_prefetch = 0 : i64, scratch_operands = 0 : i64, tpu.core_type = #tpu.core_type<tc>, window_params = [{transform_indices = @transform_0, window_bounds = array<i64: 16, 2048>}, {transform_indices = @transform_1, window_bounds = array<i64: 16, 2048>}, {pipeline_mode = #tpu.pipeline_mode<synchronous>, transform_indices = @transform_2, window_bounds = array<i64: 2048, 256>}, {pipeline_mode = #tpu.pipeline_mode<synchronous>, transform_indices = @transform_3, window_bounds = array<i64: 1, 256>}, {pipeline_mode = #tpu.pipeline_mode<synchronous>, transform_indices = @transform_4, window_bounds = array<i64: 256, 128>}, {pipeline_mode = #tpu.pipeline_mode<synchronous>, transform_indices = @transform_5, window_bounds = array<i64: 1, 128>}, {transform_indices = @transform_6, window_bounds = array<i64: 16, 256>}]} {
    %c0 = arith.constant 0 : index
    %c0_0 = arith.constant 0 : index
    %0 = vector.load %arg1[%c0, %c0_0] : memref<16x2048xbf16, #tpu.memory_space<vmem>>, vector<16x2048xbf16>
    %c0_1 = arith.constant 0 : index
    %c0_2 = arith.constant 0 : index
    %1 = vector.load %arg2[%c0_1, %c0_2] : memref<16x2048xbf16, #tpu.memory_space<vmem>>, vector<16x2048xbf16>
    %c0_3 = arith.constant 0 : index
    %c0_4 = arith.constant 0 : index
    %2 = vector.load %arg3[%c0_3, %c0_4] : memref<2048x256xbf16, #tpu.memory_space<vmem>>, vector<2048x256xbf16>
    %c0_5 = arith.constant 0 : index
    %c0_6 = arith.constant 0 : index
    %3 = vector.load %arg4[%c0_5, %c0_6] : memref<1x256xf32, #tpu.memory_space<vmem>>, vector<1x256xf32>
    %cst = arith.constant dense<0.000000e+00> : vector<16x256xf32>
    %4 = tpu.matmul %0, %2, %cst {dimension_numbers = #tpu.dot_dimension_numbers<[1], [0], [0], [1], [0, 0, 1, 1], [], []>} : vector<16x2048xbf16>, vector<2048x256xbf16>, vector<16x256xf32> -> vector<16x256xf32>
    %5 = vector.broadcast %3 : vector<1x256xf32> to vector<16x256xf32>
    %6 = arith.addf %4, %5 : vector<16x256xf32>
    %cst_7 = arith.constant dense<0.000000e+00> : vector<16x256xf32>
    %7 = tpu.matmul %1, %2, %cst_7 {dimension_numbers = #tpu.dot_dimension_numbers<[1], [0], [0], [1], [0, 0, 1, 1], [], []>} : vector<16x2048xbf16>, vector<2048x256xbf16>, vector<16x256xf32> -> vector<16x256xf32>
    %8 = vector.broadcast %3 : vector<1x256xf32> to vector<16x256xf32>
    %9 = arith.addf %7, %8 : vector<16x256xf32>
    %cst_8 = arith.constant 0.000000e+00 : f32
    %10 = vector.broadcast %cst_8 : f32 to vector<16x256xf32>
    %11 = arith.maximumf %6, %10 : vector<16x256xf32>
    %cst_9 = arith.constant 0.000000e+00 : f32
    %12 = vector.broadcast %cst_9 : f32 to vector<16x256xf32>
    %13 = arith.maximumf %9, %12 : vector<16x256xf32>
    %14 = arith.truncf %11 : vector<16x256xf32> to vector<16x256xbf16>
    %15 = arith.truncf %13 : vector<16x256xf32> to vector<16x256xbf16>
    %c0_10 = arith.constant 0 : index
    %c0_11 = arith.constant 0 : index
    %16 = vector.load %arg5[%c0_10, %c0_11] : memref<256x128xbf16, #tpu.memory_space<vmem>>, vector<256x128xbf16>
    %c0_12 = arith.constant 0 : index
    %c0_13 = arith.constant 0 : index
    %17 = vector.load %arg6[%c0_12, %c0_13] : memref<1x128xf32, #tpu.memory_space<vmem>>, vector<1x128xf32>
    %cst_14 = arith.constant dense<0.000000e+00> : vector<16x128xf32>
    %18 = tpu.matmul %14, %16, %cst_14 {dimension_numbers = #tpu.dot_dimension_numbers<[1], [0], [0], [1], [0, 0, 1, 1], [], []>} : vector<16x256xbf16>, vector<256x128xbf16>, vector<16x128xf32> -> vector<16x128xf32>
    %19 = vector.broadcast %17 : vector<1x128xf32> to vector<16x128xf32>
    %20 = arith.addf %18, %19 : vector<16x128xf32>
    %cst_15 = arith.constant dense<0.000000e+00> : vector<16x128xf32>
    %21 = tpu.matmul %15, %16, %cst_15 {dimension_numbers = #tpu.dot_dimension_numbers<[1], [0], [0], [1], [0, 0, 1, 1], [], []>} : vector<16x256xbf16>, vector<256x128xbf16>, vector<16x128xf32> -> vector<16x128xf32>
    %22 = vector.broadcast %17 : vector<1x128xf32> to vector<16x128xf32>
    %23 = arith.addf %21, %22 : vector<16x128xf32>
    %cst_16 = arith.constant 0.000000e+00 : f32
    %24 = vector.broadcast %cst_16 : f32 to vector<16x128xf32>
    %25 = arith.maximumf %20, %24 : vector<16x128xf32>
    %cst_17 = arith.constant 0.000000e+00 : f32
    %26 = vector.broadcast %cst_17 : f32 to vector<16x128xf32>
    %27 = arith.maximumf %23, %26 : vector<16x128xf32>
    %28 = arith.truncf %25 : vector<16x128xf32> to vector<16x128xbf16>
    %29 = arith.truncf %27 : vector<16x128xf32> to vector<16x128xbf16>
    %c0_18 = arith.constant 0 : index
    %c0_19 = arith.constant 0 : index
    %30 = vector.load %arg7[%c0_18, %c0_19] : memref<16x256xbf16, #tpu.memory_space<vmem>>, vector<16x128xbf16>
    tpu.vector_store %arg7[%c0_18, %c0_19], %28 {strides = array<i32>} : memref<16x256xbf16, #tpu.memory_space<vmem>>, vector<16x128xbf16>,
    %c0_20 = arith.constant 0 : index
    %c128 = arith.constant 128 : index
    %31 = vector.load %arg7[%c0_20, %c128] : memref<16x256xbf16, #tpu.memory_space<vmem>>, vector<16x128xbf16>
    tpu.vector_store %arg7[%c0_20, %c128], %29 {strides = array<i32>} : memref<16x256xbf16, #tpu.memory_space<vmem>>, vector<16x128xbf16>,
    return
  }
  func.func @transform_0(%arg0: i32) -> (i32, i32) {
    %c0_i32 = arith.constant 0 : i32
    %c0_i32_0 = arith.constant 0 : i32
    return %arg0, %c0_i32 : i32, i32
  }
  func.func @transform_1(%arg0: i32) -> (i32, i32) {
    %c0_i32 = arith.constant 0 : i32
    %c0_i32_0 = arith.constant 0 : i32
    return %arg0, %c0_i32 : i32, i32
  }
  func.func @transform_2(%arg0: i32) -> (i32, i32) {
    %c0_i32 = arith.constant 0 : i32
    %c0_i32_0 = arith.constant 0 : i32
    %c0_i32_1 = arith.constant 0 : i32
    return %c0_i32, %c0_i32_0 : i32, i32
  }
  func.func @transform_3(%arg0: i32) -> (i32, i32) {
    %c0_i32 = arith.constant 0 : i32
    %c0_i32_0 = arith.constant 0 : i32
    %c0_i32_1 = arith.constant 0 : i32
    return %c0_i32, %c0_i32_0 : i32, i32
  }
  func.func @transform_4(%arg0: i32) -> (i32, i32) {
    %c0_i32 = arith.constant 0 : i32
    %c0_i32_0 = arith.constant 0 : i32
    %c0_i32_1 = arith.constant 0 : i32
    return %c0_i32, %c0_i32_0 : i32, i32
  }
  func.func @transform_5(%arg0: i32) -> (i32, i32) {
    %c0_i32 = arith.constant 0 : i32
    %c0_i32_0 = arith.constant 0 : i32
    %c0_i32_1 = arith.constant 0 : i32
    return %c0_i32, %c0_i32_0 : i32, i32
  }
  func.func @transform_6(%arg0: i32) -> (i32, i32) {
    %c0_i32 = arith.constant 0 : i32
    %c0_i32_0 = arith.constant 0 : i32
    return %arg0, %c0_i32 : i32, i32
  }
}

</mosaic_0001>

<llo_original>
// kernel: tpu_custom_call.1
$region0: #{tpu_custom_call.1}
  #allocation0 [shape = 'u32[]', space=smem, size = 0x4, offset = 0x4, fixed_abs, tag = 'smem constant byte address 0x4 - core index']
  #allocation1 [shape = 'u32[144,128]{1,0:T(1,128)}', space=vmem, size = 0x12000, scoped, tag = 'internal scratch']
  %s0 = inlined_call_operand.hbm [shape: bf16[16,2048], index: 0, kind: input, shape index: {}]
  %s1 = inlined_call_operand.hbm [shape: bf16[16,2048], index: 1, kind: input, shape index: {}]
  %s2 = inlined_call_operand.hbm [shape: bf16[2048,256], index: 2, kind: input, shape index: {}]
  %s3 = inlined_call_operand.vmem [shape: f32[1,256], index: 3, kind: input, shape index: {}]
  %s4 = inlined_call_operand.hbm [shape: bf16[256,128], index: 4, kind: input, shape index: {}]
  %s5 = inlined_call_operand.vmem [shape: f32[1,128], index: 5, kind: input, shape index: {}]
  %s6 = inlined_call_operand.hbm [shape: bf16[16,256], index: 6, kind: output, shape index: {}]
  %s7 = sld [smem:[#allocation0]]
  $region50: #{tpu_custom_call.1} parent=0
    _
  %s9 = ssub.s32 1, %s7
  %s10 = scalar_select 0, %s9, %s7
  $region1: #{tpu_custom_call.1} parent=0
    #allocation2 [shape = 'u8[65536]{0}', space=vmem, size = 0x10000, scoped, tag = 'input window, operand 0, single buffered']
    #allocation3 [shape = 's32[1]{0}', space=sflag, size = 0x4, scoped, tag = 'scoped memory for tpu_custom_call.1']
    #allocation4 [shape = 's32[1]{0}', space=sflag, size = 0x4, scoped, tag = 'scoped memory for tpu_custom_call.1']
    #allocation5 [shape = 'u8[65536]{0}', space=vmem, size = 0x10000, scoped, tag = 'input window, operand 1, single buffered']
    #allocation6 [shape = 's32[1]{0}', space=sflag, size = 0x4, scoped, tag = 'scoped memory for tpu_custom_call.1']
    #allocation7 [shape = 'u8[1048576]{0}', space=vmem, size = 0x100000, scoped, tag = 'input window, operand 2, single buffered']
    #allocation8 [shape = 'u8[65536]{0}', space=vmem, size = 0x10000, scoped, tag = 'input window, operand 4, single buffered']
    #allocation9 [shape = 's32[1]{0}', space=sflag, size = 0x4, scoped, tag = 'scoped memory for tpu_custom_call.1']
    #allocation10 [shape = 'u8[8192]{0}', space=vmem, size = 0x2000, scoped, tag = 'output window, operand 0, single buffered']
    %11 = vsyncpa [#allocation3], 0
    %12 = vsyncpa [#allocation6], 0
    %13 = vsyncpa [#allocation9], 0
    %14 = vsyncpa [#allocation4], 0
    // Predicated region
    $region2: #{tpu_custom_call.1} parent=1 // pred_check
      _
    $region3: #{tpu_custom_call.1} parent=1 // pred_check_branch
      %16 = sbr.rel (0) target = $region5
    $region4: #{tpu_custom_call.1} parent=1 // pred_region
      %s18 = ssub.s32 2048, 2048
      %19 = vsyncadd [#allocation3], %s18
      %s20 = sshll.u32 [#allocation2], 4
      %s21 = int_to_ptr.vmem [resolvable:$true] %s20
      %26 = dma.hbm_to_vmem [thread:$0]  %s0, 2048, %s21, [#allocation3], 1024, 1024, 64
    $region5: #{tpu_custom_call.1} parent=1 // pred_fallthru
      _
    // Predicated region
    $region6: #{tpu_custom_call.1} parent=1 // pred_check
      _
    $region7: #{tpu_custom_call.1} parent=1 // pred_check_branch
      %28 = sbr.rel (0) target = $region9
    $region8: #{tpu_custom_call.1} parent=1 // pred_region
      %s30 = ssub.s32 2048, 2048
      %31 = vsyncadd [#allocation6], %s30
      %s32 = sshll.u32 [#allocation5], 4
      %s33 = int_to_ptr.vmem [resolvable:$true] %s32
      %38 = dma.hbm_to_vmem [thread:$0]  %s1, 2048, %s33, [#allocation6], 1024, 1024, 64
    $region9: #{tpu_custom_call.1} parent=1 // pred_fallthru
      _
    // Predicated region
    $region10: #{tpu_custom_call.1} parent=1 // pred_check
      _
    $region11: #{tpu_custom_call.1} parent=1 // pred_check_branch
      %40 = sbr.rel (0) target = $region13
    $region12: #{tpu_custom_call.1} parent=1 // pred_region
      %s42 = ssub.s32 32768, 32768
      %43 = vsyncadd [#allocation6], %s42
      %s44 = sshll.u32 [#allocation7], 4
      %s45 = int_to_ptr.vmem [resolvable:$true] %s44
      %50 = dma.hbm_to_vmem [thread:$0]  %s2, 32768, %s45, [#allocation6], 128, 128, 8
    $region13: #{tpu_custom_call.1} parent=1 // pred_fallthru
      _
    // Predicated region
    $region14: #{tpu_custom_call.1} parent=1 // pred_check
      _
    $region15: #{tpu_custom_call.1} parent=1 // pred_check_branch
      %52 = sbr.rel (0) target = $region17
    $region16: #{tpu_custom_call.1} parent=1 // pred_region
      _
    $region17: #{tpu_custom_call.1} parent=1 // pred_fallthru
      _
    // Predicated region
    $region18: #{tpu_custom_call.1} parent=1 // pred_check
      _
    $region19: #{tpu_custom_call.1} parent=1 // pred_check_branch
      %54 = sbr.rel (0) target = $region21
    $region20: #{tpu_custom_call.1} parent=1 // pred_region
      %s56 = ssub.s32 2048, 2048
      %57 = vsyncadd [#allocation9], %s56
      %s58 = sshll.u32 [#allocation8], 4
      %s59 = int_to_ptr.vmem [resolvable:$true] %s58
      %64 = dma.hbm_to_vmem [thread:$0]  %s4, 2048, %s59, [#allocation9], 64, 64, 4
    $region21: #{tpu_custom_call.1} parent=1 // pred_fallthru
      _
    // Predicated region
    $region22: #{tpu_custom_call.1} parent=1 // pred_check
      _
    $region23: #{tpu_custom_call.1} parent=1 // pred_check_branch
      %66 = sbr.rel (0) target = $region25
    $region24: #{tpu_custom_call.1} parent=1 // pred_region
      _
    $region25: #{tpu_custom_call.1} parent=1 // pred_fallthru
      _
    // Predicated region
    $region26: #{tpu_custom_call.1} parent=1 // pred_check
      _
    $region27: #{tpu_custom_call.1} parent=1 // pred_check_branch
      %68 = sbr.rel (0) target = $region29
    $region28: #{tpu_custom_call.1} parent=1 // pred_region
      %69 = dma.done [#allocation3], 2048
    $region29: #{tpu_custom_call.1} parent=1 // pred_fallthru
      _
    // Predicated region
    $region30: #{tpu_custom_call.1} parent=1 // pred_check
      _
    $region31: #{tpu_custom_call.1} parent=1 // pred_check_branch
      %71 = sbr.rel (0) target = $region33
    $region32: #{tpu_custom_call.1} parent=1 // pred_region
      %72 = dma.done [#allocation6], 2048
    $region33: #{tpu_custom_call.1} parent=1 // pred_fallthru
      _
    // Predicated region
    $region34: #{tpu_custom_call.1} parent=1 // pred_check
      _
    $region35: #{tpu_custom_call.1} parent=1 // pred_check_branch
      %74 = sbr.rel (0) target = $region37
    $region36: #{tpu_custom_call.1} parent=1 // pred_region
      %75 = dma.done [#allocation6], 32768
    $region37: #{tpu_custom_call.1} parent=1 // pred_fallthru
      _
    // Predicated region
    $region38: #{tpu_custom_call.1} parent=1 // pred_check
      _
    $region39: #{tpu_custom_call.1} parent=1 // pred_check_branch
      %77 = sbr.rel (0) target = $region41
    $region40: #{tpu_custom_call.1} parent=1 // pred_region
      %78 = dma.done [#allocation9], 2048
    $region41: #{tpu_custom_call.1} parent=1 // pred_fallthru
      _
    %v80 = vld [vmem:[#allocation2] sm:$0xff]
    %v81 = vld [vmem:[#allocation2 + $0x8] sm:$0xff]
    %v82 = vld [vmem:[#allocation2 + $0x10] sm:$0xff]
    %v83 = vld [vmem:[#allocation2 + $0x18] sm:$0xff]
    %v84 = vld [vmem:[#allocation2 + $0x20] sm:$0xff]
    %v85 = vld [vmem:[#allocation2 + $0x28] sm:$0xff]
    %v86 = vld [vmem:[#allocation2 + $0x30] sm:$0xff]
    %v87 = vld [vmem:[#allocation2 + $0x38] sm:$0xff]
    %v88 = vld [vmem:[#allocation2 + $0x40] sm:$0xff]
    %v89 = vld [vmem:[#allocation2 + $0x48] sm:$0xff]
    %v90 = vld [vmem:[#allocation2 + $0x50] sm:$0xff]
    %v91 = vld [vmem:[#allocation2 + $0x58] sm:$0xff]
    %v92 = vld [vmem:[#allocation2 + $0x60] sm:$0xff]
    %v93 = vld [vmem:[#allocation2 + $0x68] sm:$0xff]
    %v94 = vld [vmem:[#allocation2 + $0x70] sm:$0xff]
    %v95 = vld [vmem:[#allocation2 + $0x78] sm:$0xff]
    %v96 = vld [vmem:[#allocation5] sm:$0xff]
    %v97 = vld [vmem:[#allocation5 + $0x8] sm:$0xff]
    %v98 = vld [vmem:[#allocation5 + $0x10] sm:$0xff]
    %v99 = vld [vmem:[#allocation5 + $0x18] sm:$0xff]
    %v100 = vld [vmem:[#allocation5 + $0x20] sm:$0xff]
    %v101 = vld [vmem:[#allocation5 + $0x28] sm:$0xff]
    %v102 = vld [vmem:[#allocation5 + $0x30] sm:$0xff]
    %v103 = vld [vmem:[#allocation5 + $0x38] sm:$0xff]
    %v104 = vld [vmem:[#allocation5 + $0x40] sm:$0xff]
    %v105 = vld [vmem:[#allocation5 + $0x48] sm:$0xff]
    %v106 = vld [vmem:[#allocation5 + $0x50] sm:$0xff]
    %v107 = vld [vmem:[#allocation5 + $0x58] sm:$0xff]
    %v108 = vld [vmem:[#allocation5 + $0x60] sm:$0xff]
    %v109 = vld [vmem:[#allocation5 + $0x68] sm:$0xff]
    %v110 = vld [vmem:[#allocation5 + $0x70] sm:$0xff]
    %v111 = vld [vmem:[#allocation5 + $0x78] sm:$0xff]
    %v112 = vld [vmem:[#allocation7] sm:$0xff]
    %v113 = vld [vmem:[#allocation7 + $0x8] sm:$0xff]
    %v114 = vld [vmem:[#allocation7 + $0x10] sm:$0xff]
    %v115 = vld [vmem:[#allocation7 + $0x18] sm:$0xff]
    %v116 = vld [vmem:[#allocation7 + $0x20] sm:$0xff]
    %v117 = vld [vmem:[#allocation7 + $0x28] sm:$0xff]
    %v118 = vld [vmem:[#allocation7 + $0x30] sm:$0xff]
    %v119 = vld [vmem:[#allocation7 + $0x38] sm:$0xff]
    %v120 = vld [vmem:[#allocation7 + $0x40] sm:$0xff]
    %v121 = vld [vmem:[#allocation7 + $0x48] sm:$0xff]
    %v122 = vld [vmem:[#allocation7 + $0x50] sm:$0xff]
    %v123 = vld [vmem:[#allocation7 + $0x58] sm:$0xff]
    %v124 = vld [vmem:[#allocation7 + $0x60] sm:$0xff]
    %v125 = vld [vmem:[#allocation7 + $0x68] sm:$0xff]
    %v126 = vld [vmem:[#allocation7 + $0x70] sm:$0xff]
    %v127 = vld [vmem:[#allocation7 + $0x78] sm:$0xff]
    %v128 = vld [vmem:[#allocation7 + $0x80] sm:$0xff]
    %v129 = vld [vmem:[#allocation7 + $0x88] sm:$0xff]
    %v130 = vld [vmem:[#allocation7 + $0x90] sm:$0xff]
    %v131 = vld [vmem:[#allocation7 + $0x98] sm:$0xff]
    %v132 = vld [vmem:[#allocation7 + $0xa0] sm:$0xff]
    %v133 = vld [vmem:[#allocation7 + $0xa8] sm:$0xff]
    %v134 = vld [vmem:[#allocation7 + $0xb0] sm:$0xff]
    %v135 = vld [vmem:[#allocation7 + $0xb8] sm:$0xff]
    %v136 = vld [vmem:[#allocation7 + $0xc0] sm:$0xff]
    %v137 = vld [vmem:[#allocation7 + $0xc8] sm:$0xff]
    %v138 = vld [vmem:[#allocation7 + $0xd0] sm:$0xff]
    %v139 = vld [vmem:[#allocation7 + $0xd8] sm:$0xff]
    %v140 = vld [vmem:[#allocation7 + $0xe0] sm:$0xff]
    %v141 = vld [vmem:[#allocation7 + $0xe8] sm:$0xff]
    %v142 = vld [vmem:[#allocation7 + $0xf0] sm:$0xff]
    %v143 = vld [vmem:[#allocation7 + $0xf8] sm:$0xff]
    %v144 = vld [vmem:[#allocation7 + $0x100] sm:$0xff]
    %v145 = vld [vmem:[#allocation7 + $0x108] sm:$0xff]
    %v146 = vld [vmem:[#allocation7 + $0x110] sm:$0xff]
    %v147 = vld [vmem:[#allocation7 + $0x118] sm:$0xff]
    %v148 = vld [vmem:[#allocation7 + $0x120] sm:$0xff]
    %v149 = vld [vmem:[#allocation7 + $0x128] sm:$0xff]
    %v150 = vld [vmem:[#allocation7 + $0x130] sm:$0xff]
    %v151 = vld [vmem:[#allocation7 + $0x138] sm:$0xff]
    %v152 = vld [vmem:[#allocation7 + $0x140] sm:$0xff]
    %v153 = vld [vmem:[#allocation7 + $0x148] sm:$0xff]
    %v154 = vld [vmem:[#allocation7 + $0x150] sm:$0xff]
    %v155 = vld [vmem:[#allocation7 + $0x158] sm:$0xff]
    %v156 = vld [vmem:[#allocation7 + $0x160] sm:$0xff]
    %v157 = vld [vmem:[#allocation7 + $0x168] sm:$0xff]
    %v158 = vld [vmem:[#allocation7 + $0x170] sm:$0xff]
    %v159 = vld [vmem:[#allocation7 + $0x178] sm:$0xff]
    %v160 = vld [vmem:[#allocation7 + $0x180] sm:$0xff]
    %v161 = vld [vmem:[#allocation7 + $0x188] sm:$0xff]
    %v162 = vld [vmem:[#allocation7 + $0x190] sm:$0xff]
    %v163 = vld [vmem:[#allocation7 + $0x198] sm:$0xff]
    %v164 = vld [vmem:[#allocation7 + $0x1a0] sm:$0xff]
    %v165 = vld [vmem:[#allocation7 + $0x1a8] sm:$0xff]
    %v166 = vld [vmem:[#allocation7 + $0x1b0] sm:$0xff]
    %v167 = vld [vmem:[#allocation7 + $0x1b8] sm:$0xff]
    %v168 = vld [vmem:[#allocation7 + $0x1c0] sm:$0xff]
    %v169 = vld [vmem:[#allocation7 + $0x1c8] sm:$0xff]
    %v170 = vld [vmem:[#allocation7 + $0x1d0] sm:$0xff]
    %v171 = vld [vmem:[#allocation7 + $0x1d8] sm:$0xff]
    %v172 = vld [vmem:[#allocation7 + $0x1e0] sm:$0xff]
    %v173 = vld [vmem:[#allocation7 + $0x1e8] sm:$0xff]
    %v174 = vld [vmem:[#allocation7 + $0x1f0] sm:$0xff]
    %v175 = vld [vmem:[#allocation7 + $0x1f8] sm:$0xff]
    %v176 = vld [vmem:[#allocation7 + $0x200] sm:$0xff]
    %v177 = vld [vmem:[#allocation7 + $0x208] sm:$0xff]
    %v178 = vld [vmem:[#allocation7 + $0x210] sm:$0xff]
    %v179 = vld [vmem:[#allocation7 + $0x218] sm:$0xff]
    %v180 = vld [vmem:[#allocation7 + $0x220] sm:$0xff]
    %v181 = vld [vmem:[#allocation7 + $0x228] sm:$0xff]
    %v182 = vld [vmem:[#allocation7 + $0x230] sm:$0xff]
    %v183 = vld [vmem:[#allocation7 + $0x238] sm:$0xff]
    %v184 = vld [vmem:[#allocation7 + $0x240] sm:$0xff]
    %v185 = vld [vmem:[#allocation7 + $0x248] sm:$0xff]
    %v186 = vld [vmem:[#allocation7 + $0x250] sm:$0xff]
    %v187 = vld [vmem:[#allocation7 + $0x258] sm:$0xff]
    %v188 = vld [vmem:[#allocation7 + $0x260] sm:$0xff]
    %v189 = vld [vmem:[#allocation7 + $0x268] sm:$0xff]
    %v190 = vld [vmem:[#allocation7 + $0x270] sm:$0xff]
    %v191 = vld [vmem:[#allocation7 + $0x278] sm:$0xff]
    %v192 = vld [vmem:[#allocation7 + $0x280] sm:$0xff]
    %v193 = vld [vmem:[#allocation7 + $0x288] sm:$0xff]
    %v194 = vld [vmem:[#allocation7 + $0x290] sm:$0xff]
    %v195 = vld [vmem:[#allocation7 + $0x298] sm:$0xff]
    %v196 = vld [vmem:[#allocation7 + $0x2a0] sm:$0xff]
    %v197 = vld [vmem:[#allocation7 + $0x2a8] sm:$0xff]
    %v198 = vld [vmem:[#allocation7 + $0x2b0] sm:$0xff]
    %v199 = vld [vmem:[#allocation7 + $0x2b8] sm:$0xff]
    %v200 = vld [vmem:[#allocation7 + $0x2c0] sm:$0xff]
    %v201 = vld [vmem:[#allocation7 + $0x2c8] sm:$0xff]
    %v202 = vld [vmem:[#allocation7 + $0x2d0] sm:$0xff]
    %v203 = vld [vmem:[#allocation7 + $0x2d8] sm:$0xff]
    %v204 = vld [vmem:[#allocation7 + $0x2e0] sm:$0xff]
    %v205 = vld [vmem:[#allocation7 + $0x2e8] sm:$0xff]
    %v206 = vld [vmem:[#allocation7 + $0x2f0] sm:$0xff]
    %v207 = vld [vmem:[#allocation7 + $0x2f8] sm:$0xff]
    %v208 = vld [vmem:[#allocation7 + $0x300] sm:$0xff]
    %v209 = vld [vmem:[#allocation7 + $0x308] sm:$0xff]
    %v210 = vld [vmem:[#allocation7 + $0x310] sm:$0xff]
    %v211 = vld [vmem:[#allocation7 + $0x318] sm:$0xff]
    %v212 = vld [vmem:[#allocation7 + $0x320] sm:$0xff]
    %v213 = vld [vmem:[#allocation7 + $0x328] sm:$0xff]
    %v214 = vld [vmem:[#allocation7 + $0x330] sm:$0xff]
    %v215 = vld [vmem:[#allocation7 + $0x338] sm:$0xff]
    %v216 = vld [vmem:[#allocation7 + $0x340] sm:$0xff]
    %v217 = vld [vmem:[#allocation7 + $0x348] sm:$0xff]
    %v218 = vld [vmem:[#allocation7 + $0x350] sm:$0xff]
    %v219 = vld [vmem:[#allocation7 + $0x358] sm:$0xff]
    %v220 = vld [vmem:[#allocation7 + $0x360] sm:$0xff]
    %v221 = vld [vmem:[#allocation7 + $0x368] sm:$0xff]
    %v222 = vld [vmem:[#allocation7 + $0x370] sm:$0xff]
    %v223 = vld [vmem:[#allocation7 + $0x378] sm:$0xff]
    %v224 = vld [vmem:[#allocation7 + $0x380] sm:$0xff]
    %v225 = vld [vmem:[#allocation7 + $0x388] sm:$0xff]
    %v226 = vld [vmem:[#allocation7 + $0x390] sm:$0xff]
    %v227 = vld [vmem:[#allocation7 + $0x398] sm:$0xff]
    %v228 = vld [vmem:[#allocation7 + $0x3a0] sm:$0xff]
    %v229 = vld [vmem:[#allocation7 + $0x3a8] sm:$0xff]
    %v230 = vld [vmem:[#allocation7 + $0x3b0] sm:$0xff]
    %v231 = vld [vmem:[#allocation7 + $0x3b8] sm:$0xff]
    %v232 = vld [vmem:[#allocation7 + $0x3c0] sm:$0xff]
    %v233 = vld [vmem:[#allocation7 + $0x3c8] sm:$0xff]
    %v234 = vld [vmem:[#allocation7 + $0x3d0] sm:$0xff]
    %v235 = vld [vmem:[#allocation7 + $0x3d8] sm:$0xff]
    %v236 = vld [vmem:[#allocation7 + $0x3e0] sm:$0xff]
    %v237 = vld [vmem:[#allocation7 + $0x3e8] sm:$0xff]
    %v238 = vld [vmem:[#allocation7 + $0x3f0] sm:$0xff]
    %v239 = vld [vmem:[#allocation7 + $0x3f8] sm:$0xff]
    %v240 = vld [vmem:[#allocation7 + $0x400] sm:$0xff]
    %v241 = vld [vmem:[#allocation7 + $0x408] sm:$0xff]
    %v242 = vld [vmem:[#allocation7 + $0x410] sm:$0xff]
    %v243 = vld [vmem:[#allocation7 + $0x418] sm:$0xff]
    %v244 = vld [vmem:[#allocation7 + $0x420] sm:$0xff]
    %v245 = vld [vmem:[#allocation7 + $0x428] sm:$0xff]
    %v246 = vld [vmem:[#allocation7 + $0x430] sm:$0xff]
    %v247 = vld [vmem:[#allocation7 + $0x438] sm:$0xff]
    %v248 = vld [vmem:[#allocation7 + $0x440] sm:$0xff]
    %v249 = vld [vmem:[#allocation7 + $0x448] sm:$0xff]
    %v250 = vld [vmem:[#allocation7 + $0x450] sm:$0xff]
    %v251 = vld [vmem:[#allocation7 + $0x458] sm:$0xff]
    %v252 = vld [vmem:[#allocation7 + $0x460] sm:$0xff]
    %v253 = vld [vmem:[#allocation7 + $0x468] sm:$0xff]
    %v254 = vld [vmem:[#allocation7 + $0x470] sm:$0xff]
    %v255 = vld [vmem:[#allocation7 + $0x478] sm:$0xff]
    %v256 = vld [vmem:[#allocation7 + $0x480] sm:$0xff]
    %v257 = vld [vmem:[#allocation7 + $0x488] sm:$0xff]
    %v258 = vld [vmem:[#allocation7 + $0x490] sm:$0xff]
    %v259 = vld [vmem:[#allocation7 + $0x498] sm:$0xff]
    %v260 = vld [vmem:[#allocation7 + $0x4a0] sm:$0xff]
    %v261 = vld [vmem:[#allocation7 + $0x4a8] sm:$0xff]
    %v262 = vld [vmem:[#allocation7 + $0x4b0] sm:$0xff]
    %v263 = vld [vmem:[#allocation7 + $0x4b8] sm:$0xff]
    %v264 = vld [vmem:[#allocation7 + $0x4c0] sm:$0xff]
    %v265 = vld [vmem:[#allocation7 + $0x4c8] sm:$0xff]
    %v266 = vld [vmem:[#allocation7 + $0x4d0] sm:$0xff]
    %v267 = vld [vmem:[#allocation7 + $0x4d8] sm:$0xff]
    %v268 = vld [vmem:[#allocation7 + $0x4e0] sm:$0xff]
    %v269 = vld [vmem:[#allocation7 + $0x4e8] sm:$0xff]
    %v270 = vld [vmem:[#allocation7 + $0x4f0] sm:$0xff]
    %v271 = vld [vmem:[#allocation7 + $0x4f8] sm:$0xff]
    %v272 = vld [vmem:[#allocation7 + $0x500] sm:$0xff]
    %v273 = vld [vmem:[#allocation7 + $0x508] sm:$0xff]
    %v274 = vld [vmem:[#allocation7 + $0x510] sm:$0xff]
    %v275 = vld [vmem:[#allocation7 + $0x518] sm:$0xff]
    %v276 = vld [vmem:[#allocation7 + $0x520] sm:$0xff]
    %v277 = vld [vmem:[#allocation7 + $0x528] sm:$0xff]
    %v278 = vld [vmem:[#allocation7 + $0x530] sm:$0xff]
    %v279 = vld [vmem:[#allocation7 + $0x538] sm:$0xff]
    %v280 = vld [vmem:[#allocation7 + $0x540] sm:$0xff]
    %v281 = vld [vmem:[#allocation7 + $0x548] sm:$0xff]
    %v282 = vld [vmem:[#allocation7 + $0x550] sm:$0xff]
    %v283 = vld [vmem:[#allocation7 + $0x558] sm:$0xff]
    %v284 = vld [vmem:[#allocation7 + $0x560] sm:$0xff]
    %v285 = vld [vmem:[#allocation7 + $0x568] sm:$0xff]
    %v286 = vld [vmem:[#allocation7 + $0x570] sm:$0xff]
    %v287 = vld [vmem:[#allocation7 + $0x578] sm:$0xff]
    %v288 = vld [vmem:[#allocation7 + $0x580] sm:$0xff]
    %v289 = vld [vmem:[#allocation7 + $0x588] sm:$0xff]
    %v290 = vld [vmem:[#allocation7 + $0x590] sm:$0xff]
    %v291 = vld [vmem:[#allocation7 + $0x598] sm:$0xff]
    %v292 = vld [vmem:[#allocation7 + $0x5a0] sm:$0xff]
    %v293 = vld [vmem:[#allocation7 + $0x5a8] sm:$0xff]
    %v294 = vld [vmem:[#allocation7 + $0x5b0] sm:$0xff]
    %v295 = vld [vmem:[#allocation7 + $0x5b8] sm:$0xff]
    %v296 = vld [vmem:[#allocation7 + $0x5c0] sm:$0xff]
    %v297 = vld [vmem:[#allocation7 + $0x5c8] sm:$0xff]
    %v298 = vld [vmem:[#allocation7 + $0x5d0] sm:$0xff]
    %v299 = vld [vmem:[#allocation7 + $0x5d8] sm:$0xff]
    %v300 = vld [vmem:[#allocation7 + $0x5e0] sm:$0xff]
    %v301 = vld [vmem:[#allocation7 + $0x5e8] sm:$0xff]
    %v302 = vld [vmem:[#allocation7 + $0x5f0] sm:$0xff]
    %v303 = vld [vmem:[#allocation7 + $0x5f8] sm:$0xff]
    %v304 = vld [vmem:[#allocation7 + $0x600] sm:$0xff]
    %v305 = vld [vmem:[#allocation7 + $0x608] sm:$0xff]
    %v306 = vld [vmem:[#allocation7 + $0x610] sm:$0xff]
    %v307 = vld [vmem:[#allocation7 + $0x618] sm:$0xff]
    %v308 = vld [vmem:[#allocation7 + $0x620] sm:$0xff]
    %v309 = vld [vmem:[#allocation7 + $0x628] sm:$0xff]
    %v310 = vld [vmem:[#allocation7 + $0x630] sm:$0xff]
    %v311 = vld [vmem:[#allocation7 + $0x638] sm:$0xff]
    %v312 = vld [vmem:[#allocation7 + $0x640] sm:$0xff]
    %v313 = vld [vmem:[#allocation7 + $0x648] sm:$0xff]
    %v314 = vld [vmem:[#allocation7 + $0x650] sm:$0xff]
    %v315 = vld [vmem:[#allocation7 + $0x658] sm:$0xff]
    %v316 = vld [vmem:[#allocation7 + $0x660] sm:$0xff]
    %v317 = vld [vmem:[#allocation7 + $0x668] sm:$0xff]
    %v318 = vld [vmem:[#allocation7 + $0x670] sm:$0xff]
    %v319 = vld [vmem:[#allocation7 + $0x678] sm:$0xff]
    %v320 = vld [vmem:[#allocation7 + $0x680] sm:$0xff]
    %v321 = vld [vmem:[#allocation7 + $0x688] sm:$0xff]
    %v322 = vld [vmem:[#allocation7 + $0x690] sm:$0xff]
    %v323 = vld [vmem:[#allocation7 + $0x698] sm:$0xff]
    %v324 = vld [vmem:[#allocation7 + $0x6a0] sm:$0xff]
    %v325 = vld [vmem:[#allocation7 + $0x6a8] sm:$0xff]
    %v326 = vld [vmem:[#allocation7 + $0x6b0] sm:$0xff]
    %v327 = vld [vmem:[#allocation7 + $0x6b8] sm:$0xff]
    %v328 = vld [vmem:[#allocation7 + $0x6c0] sm:$0xff]
    %v329 = vld [vmem:[#allocation7 + $0x6c8] sm:$0xff]
    %v330 = vld [vmem:[#allocation7 + $0x6d0] sm:$0xff]
    %v331 = vld [vmem:[#allocation7 + $0x6d8] sm:$0xff]
    %v332 = vld [vmem:[#allocation7 + $0x6e0] sm:$0xff]
    %v333 = vld [vmem:[#allocation7 + $0x6e8] sm:$0xff]
    %v334 = vld [vmem:[#allocation7 + $0x6f0] sm:$0xff]
    %v335 = vld [vmem:[#allocation7 + $0x6f8] sm:$0xff]
    %v336 = vld [vmem:[#allocation7 + $0x700] sm:$0xff]
    %v337 = vld [vmem:[#allocation7 + $0x708] sm:$0xff]
    %v338 = vld [vmem:[#allocation7 + $0x710] sm:$0xff]
    %v339 = vld [vmem:[#allocation7 + $0x718] sm:$0xff]
    %v340 = vld [vmem:[#allocation7 + $0x720] sm:$0xff]
    %v341 = vld [vmem:[#allocation7 + $0x728] sm:$0xff]
    %v342 = vld [vmem:[#allocation7 + $0x730] sm:$0xff]
    %v343 = vld [vmem:[#allocation7 + $0x738] sm:$0xff]
    %v344 = vld [vmem:[#allocation7 + $0x740] sm:$0xff]
    %v345 = vld [vmem:[#allocation7 + $0x748] sm:$0xff]
    %v346 = vld [vmem:[#allocation7 + $0x750] sm:$0xff]
    %v347 = vld [vmem:[#allocation7 + $0x758] sm:$0xff]
    %v348 = vld [vmem:[#allocation7 + $0x760] sm:$0xff]
    %v349 = vld [vmem:[#allocation7 + $0x768] sm:$0xff]
    %v350 = vld [vmem:[#allocation7 + $0x770] sm:$0xff]
    %v351 = vld [vmem:[#allocation7 + $0x778] sm:$0xff]
    %v352 = vld [vmem:[#allocation7 + $0x780] sm:$0xff]
    %v353 = vld [vmem:[#allocation7 + $0x788] sm:$0xff]
    %v354 = vld [vmem:[#allocation7 + $0x790] sm:$0xff]
    %v355 = vld [vmem:[#allocation7 + $0x798] sm:$0xff]
    %v356 = vld [vmem:[#allocation7 + $0x7a0] sm:$0xff]
    %v357 = vld [vmem:[#allocation7 + $0x7a8] sm:$0xff]
    %v358 = vld [vmem:[#allocation7 + $0x7b0] sm:$0xff]
    %v359 = vld [vmem:[#allocation7 + $0x7b8] sm:$0xff]
    %v360 = vld [vmem:[#allocation7 + $0x7c0] sm:$0xff]
    %v361 = vld [vmem:[#allocation7 + $0x7c8] sm:$0xff]
    %v362 = vld [vmem:[#allocation7 + $0x7d0] sm:$0xff]
    %v363 = vld [vmem:[#allocation7 + $0x7d8] sm:$0xff]
    %v364 = vld [vmem:[#allocation7 + $0x7e0] sm:$0xff]
    %v365 = vld [vmem:[#allocation7 + $0x7e8] sm:$0xff]
    %v366 = vld [vmem:[#allocation7 + $0x7f0] sm:$0xff]
    %v367 = vld [vmem:[#allocation7 + $0x7f8] sm:$0xff]
    %v368 = vld [vmem:[%s3] sm:$0x3]
    %v370 = vlaneseq
    %v371 = vshrl.u32 %v370, 7
    %v372 = vsub.s32 0, %v371
    %v373 = vrot.slane %v368, %v372
    %v374 = vlaneseq
    %v375 = vshrl.u32 %v374, 7
    %v376 = vsub.s32 1, %v375
    %v377 = vrot.slane %v368, %v376
    %v396 = vunpack.c.l.b16 %v80
    %v397 = vunpack.c.h.b16 %v80
    %v398 = vunpack.c.l.b16 %v81
    %v399 = vunpack.c.h.b16 %v81
    %v400 = vunpack.c.l.b16 %v82
    %v401 = vunpack.c.h.b16 %v82
    %v402 = vunpack.c.l.b16 %v83
    %v403 = vunpack.c.h.b16 %v83
    %v404 = vunpack.c.l.b16 %v84
    %v405 = vunpack.c.h.b16 %v84
    %v406 = vunpack.c.l.b16 %v85
    %v407 = vunpack.c.h.b16 %v85
    %v408 = vunpack.c.l.b16 %v86
    %v409 = vunpack.c.h.b16 %v86
    %v410 = vunpack.c.l.b16 %v87
    %v411 = vunpack.c.h.b16 %v87
    %v412 = vunpack.c.l.b16 %v88
    %v413 = vunpack.c.h.b16 %v88
    %v414 = vunpack.c.l.b16 %v89
    %v415 = vunpack.c.h.b16 %v89
    %v416 = vunpack.c.l.b16 %v90
    %v417 = vunpack.c.h.b16 %v90
    %v418 = vunpack.c.l.b16 %v91
    %v419 = vunpack.c.h.b16 %v91
    %v420 = vunpack.c.l.b16 %v92
    %v421 = vunpack.c.h.b16 %v92
    %v422 = vunpack.c.l.b16 %v93
    %v423 = vunpack.c.h.b16 %v93
    %v424 = vunpack.c.l.b16 %v94
    %v425 = vunpack.c.h.b16 %v94
    %v426 = vunpack.c.l.b16 %v95
    %v427 = vunpack.c.h.b16 %v95
    %v428 = vpack.c.b16 %v412, %v396
    %v429 = vpack.c.b16 %v413, %v397
    %v430 = vpack.c.b16 %v414, %v398
    %v431 = vpack.c.b16 %v415, %v399
    %v432 = vpack.c.b16 %v416, %v400
    %v433 = vpack.c.b16 %v417, %v401
    %v434 = vpack.c.b16 %v418, %v402
    %v435 = vpack.c.b16 %v419, %v403
    %v436 = vpack.c.b16 %v420, %v404
    %v437 = vpack.c.b16 %v421, %v405
    %v438 = vpack.c.b16 %v422, %v406
    %v439 = vpack.c.b16 %v423, %v407
    %v440 = vpack.c.b16 %v424, %v408
    %v441 = vpack.c.b16 %v425, %v409
    %v442 = vpack.c.b16 %v426, %v410
    %v443 = vpack.c.b16 %v427, %v411
    %v716 = vunpack.c.l.b16 %v112
    %v717 = vunpack.c.h.b16 %v112
    %v718 = vunpack.c.l.b16 %v113
    %v719 = vunpack.c.h.b16 %v113
    %v720 = vunpack.c.l.b16 %v114
    %v721 = vunpack.c.h.b16 %v114
    %v722 = vunpack.c.l.b16 %v115
    %v723 = vunpack.c.h.b16 %v115
    %v724 = vunpack.c.l.b16 %v116
    %v725 = vunpack.c.h.b16 %v116
    %v726 = vunpack.c.l.b16 %v117
    %v727 = vunpack.c.h.b16 %v117
    %v728 = vunpack.c.l.b16 %v118
    %v729 = vunpack.c.h.b16 %v118
    %v730 = vunpack.c.l.b16 %v119
    %v731 = vunpack.c.h.b16 %v119
    %v732 = vunpack.c.l.b16 %v120
    %v733 = vunpack.c.h.b16 %v120
    %v734 = vunpack.c.l.b16 %v121
    %v735 = vunpack.c.h.b16 %v121
    %v736 = vunpack.c.l.b16 %v122
    %v737 = vunpack.c.h.b16 %v122
    %v738 = vunpack.c.l.b16 %v123
    %v739 = vunpack.c.h.b16 %v123
    %v740 = vunpack.c.l.b16 %v124
    %v741 = vunpack.c.h.b16 %v124
    %v742 = vunpack.c.l.b16 %v125
    %v743 = vunpack.c.h.b16 %v125
    %v744 = vunpack.c.l.b16 %v126
    %v745 = vunpack.c.h.b16 %v126
    %v746 = vunpack.c.l.b16 %v127
    %v747 = vunpack.c.h.b16 %v127
    %v748 = vunpack.c.l.b16 %v128
    %v749 = vunpack.c.h.b16 %v128
    %v750 = vunpack.c.l.b16 %v129
    %v751 = vunpack.c.h.b16 %v129
    %v752 = vunpack.c.l.b16 %v130
    %v753 = vunpack.c.h.b16 %v130
    %v754 = vunpack.c.l.b16 %v131
    %v755 = vunpack.c.h.b16 %v131
    %v756 = vunpack.c.l.b16 %v132
    %v757 = vunpack.c.h.b16 %v132
    %v758 = vunpack.c.l.b16 %v133
    %v759 = vunpack.c.h.b16 %v133
    %v760 = vunpack.c.l.b16 %v134
    %v761 = vunpack.c.h.b16 %v134
    %v762 = vunpack.c.l.b16 %v135
    %v763 = vunpack.c.h.b16 %v135
    %v764 = vunpack.c.l.b16 %v136
    %v765 = vunpack.c.h.b16 %v136
    %v766 = vunpack.c.l.b16 %v137
    %v767 = vunpack.c.h.b16 %v137
    %v768 = vunpack.c.l.b16 %v138
    %v769 = vunpack.c.h.b16 %v138
    %v770 = vunpack.c.l.b16 %v139
    %v771 = vunpack.c.h.b16 %v139
    %v772 = vunpack.c.l.b16 %v140
    %v773 = vunpack.c.h.b16 %v140
    %v774 = vunpack.c.l.b16 %v141
    %v775 = vunpack.c.h.b16 %v141
    %v776 = vunpack.c.l.b16 %v142
    %v777 = vunpack.c.h.b16 %v142
    %v778 = vunpack.c.l.b16 %v143
    %v779 = vunpack.c.h.b16 %v143
    %v780 = vunpack.c.l.b16 %v144
    %v781 = vunpack.c.h.b16 %v144
    %v782 = vunpack.c.l.b16 %v145
    %v783 = vunpack.c.h.b16 %v145
    %v784 = vunpack.c.l.b16 %v146
    %v785 = vunpack.c.h.b16 %v146
    %v786 = vunpack.c.l.b16 %v147
    %v787 = vunpack.c.h.b16 %v147
    %v788 = vunpack.c.l.b16 %v148
    %v789 = vunpack.c.h.b16 %v148
    %v790 = vunpack.c.l.b16 %v149
    %v791 = vunpack.c.h.b16 %v149
    %v792 = vunpack.c.l.b16 %v150
    %v793 = vunpack.c.h.b16 %v150
    %v794 = vunpack.c.l.b16 %v151
    %v795 = vunpack.c.h.b16 %v151
    %v796 = vunpack.c.l.b16 %v152
    %v797 = vunpack.c.h.b16 %v152
    %v798 = vunpack.c.l.b16 %v153
    %v799 = vunpack.c.h.b16 %v153
    %v800 = vunpack.c.l.b16 %v154
    %v801 = vunpack.c.h.b16 %v154
    %v802 = vunpack.c.l.b16 %v155
    %v803 = vunpack.c.h.b16 %v155
    %v804 = vunpack.c.l.b16 %v156
    %v805 = vunpack.c.h.b16 %v156
    %v806 = vunpack.c.l.b16 %v157
    %v807 = vunpack.c.h.b16 %v157
    %v808 = vunpack.c.l.b16 %v158
    %v809 = vunpack.c.h.b16 %v158
    %v810 = vunpack.c.l.b16 %v159
    %v811 = vunpack.c.h.b16 %v159
    %v812 = vunpack.c.l.b16 %v160
    %v813 = vunpack.c.h.b16 %v160
    %v814 = vunpack.c.l.b16 %v161
    %v815 = vunpack.c.h.b16 %v161
    %v816 = vunpack.c.l.b16 %v162
    %v817 = vunpack.c.h.b16 %v162
    %v818 = vunpack.c.l.b16 %v163
    %v819 = vunpack.c.h.b16 %v163
    %v820 = vunpack.c.l.b16 %v164
    %v821 = vunpack.c.h.b16 %v164
    %v822 = vunpack.c.l.b16 %v165
    %v823 = vunpack.c.h.b16 %v165
    %v824 = vunpack.c.l.b16 %v166
    %v825 = vunpack.c.h.b16 %v166
    %v826 = vunpack.c.l.b16 %v167
    %v827 = vunpack.c.h.b16 %v167
    %v828 = vunpack.c.l.b16 %v168
    %v829 = vunpack.c.h.b16 %v168
    %v830 = vunpack.c.l.b16 %v169
    %v831 = vunpack.c.h.b16 %v169
    %v832 = vunpack.c.l.b16 %v170
    %v833 = vunpack.c.h.b16 %v170
    %v834 = vunpack.c.l.b16 %v171
    %v835 = vunpack.c.h.b16 %v171
    %v836 = vunpack.c.l.b16 %v172
    %v837 = vunpack.c.h.b16 %v172
    %v838 = vunpack.c.l.b16 %v173
    %v839 = vunpack.c.h.b16 %v173
    %v840 = vunpack.c.l.b16 %v174
    %v841 = vunpack.c.h.b16 %v174
    %v842 = vunpack.c.l.b16 %v175
    %v843 = vunpack.c.h.b16 %v175
    %v844 = vunpack.c.l.b16 %v176
    %v845 = vunpack.c.h.b16 %v176
    %v846 = vunpack.c.l.b16 %v177
    %v847 = vunpack.c.h.b16 %v177
    %v848 = vunpack.c.l.b16 %v178
    %v849 = vunpack.c.h.b16 %v178
    %v850 = vunpack.c.l.b16 %v179
    %v851 = vunpack.c.h.b16 %v179
    %v852 = vunpack.c.l.b16 %v180
    %v853 = vunpack.c.h.b16 %v180
    %v854 = vunpack.c.l.b16 %v181
    %v855 = vunpack.c.h.b16 %v181
    %v856 = vunpack.c.l.b16 %v182
    %v857 = vunpack.c.h.b16 %v182
    %v858 = vunpack.c.l.b16 %v183
    %v859 = vunpack.c.h.b16 %v183
    %v860 = vunpack.c.l.b16 %v184
    %v861 = vunpack.c.h.b16 %v184
    %v862 = vunpack.c.l.b16 %v185
    %v863 = vunpack.c.h.b16 %v185
    %v864 = vunpack.c.l.b16 %v186
    %v865 = vunpack.c.h.b16 %v186
    %v866 = vunpack.c.l.b16 %v187
    %v867 = vunpack.c.h.b16 %v187
    %v868 = vunpack.c.l.b16 %v188
    %v869 = vunpack.c.h.b16 %v188
    %v870 = vunpack.c.l.b16 %v189
    %v871 = vunpack.c.h.b16 %v189
    %v872 = vunpack.c.l.b16 %v190
    %v873 = vunpack.c.h.b16 %v190
    %v874 = vunpack.c.l.b16 %v191
    %v875 = vunpack.c.h.b16 %v191
    %v876 = vunpack.c.l.b16 %v192
    %v877 = vunpack.c.h.b16 %v192
    %v878 = vunpack.c.l.b16 %v193
    %v879 = vunpack.c.h.b16 %v193
    %v880 = vunpack.c.l.b16 %v194
    %v881 = vunpack.c.h.b16 %v194
    %v882 = vunpack.c.l.b16 %v195
    %v883 = vunpack.c.h.b16 %v195
    %v884 = vunpack.c.l.b16 %v196
    %v885 = vunpack.c.h.b16 %v196
    %v886 = vunpack.c.l.b16 %v197
    %v887 = vunpack.c.h.b16 %v197
    %v888 = vunpack.c.l.b16 %v198
    %v889 = vunpack.c.h.b16 %v198
    %v890 = vunpack.c.l.b16 %v199
    %v891 = vunpack.c.h.b16 %v199
    %v892 = vunpack.c.l.b16 %v200
    %v893 = vunpack.c.h.b16 %v200
    %v894 = vunpack.c.l.b16 %v201
    %v895 = vunpack.c.h.b16 %v201
    %v896 = vunpack.c.l.b16 %v202
    %v897 = vunpack.c.h.b16 %v202
    %v898 = vunpack.c.l.b16 %v203
    %v899 = vunpack.c.h.b16 %v203
    %v900 = vunpack.c.l.b16 %v204
    %v901 = vunpack.c.h.b16 %v204
    %v902 = vunpack.c.l.b16 %v205
    %v903 = vunpack.c.h.b16 %v205
    %v904 = vunpack.c.l.b16 %v206
    %v905 = vunpack.c.h.b16 %v206
    %v906 = vunpack.c.l.b16 %v207
    %v907 = vunpack.c.h.b16 %v207
    %v908 = vunpack.c.l.b16 %v208
    %v909 = vunpack.c.h.b16 %v208
    %v910 = vunpack.c.l.b16 %v209
    %v911 = vunpack.c.h.b16 %v209
    %v912 = vunpack.c.l.b16 %v210
    %v913 = vunpack.c.h.b16 %v210
    %v914 = vunpack.c.l.b16 %v211
    %v915 = vunpack.c.h.b16 %v211
    %v916 = vunpack.c.l.b16 %v212
    %v917 = vunpack.c.h.b16 %v212
    %v918 = vunpack.c.l.b16 %v213
    %v919 = vunpack.c.h.b16 %v213
    %v920 = vunpack.c.l.b16 %v214
    %v921 = vunpack.c.h.b16 %v214
    %v922 = vunpack.c.l.b16 %v215
    %v923 = vunpack.c.h.b16 %v215
    %v924 = vunpack.c.l.b16 %v216
    %v925 = vunpack.c.h.b16 %v216
    %v926 = vunpack.c.l.b16 %v217
    %v927 = vunpack.c.h.b16 %v217
    %v928 = vunpack.c.l.b16 %v218
    %v929 = vunpack.c.h.b16 %v218
    %v930 = vunpack.c.l.b16 %v219
    %v931 = vunpack.c.h.b16 %v219
    %v932 = vunpack.c.l.b16 %v220
    %v933 = vunpack.c.h.b16 %v220
    %v934 = vunpack.c.l.b16 %v221
    %v935 = vunpack.c.h.b16 %v221
    %v936 = vunpack.c.l.b16 %v222
    %v937 = vunpack.c.h.b16 %v222
    %v938 = vunpack.c.l.b16 %v223
    %v939 = vunpack.c.h.b16 %v223
    %v940 = vunpack.c.l.b16 %v224
    %v941 = vunpack.c.h.b16 %v224
    %v942 = vunpack.c.l.b16 %v225
    %v943 = vunpack.c.h.b16 %v225
    %v944 = vunpack.c.l.b16 %v226
    %v945 = vunpack.c.h.b16 %v226
    %v946 = vunpack.c.l.b16 %v227
    %v947 = vunpack.c.h.b16 %v227
    %v948 = vunpack.c.l.b16 %v228
    %v949 = vunpack.c.h.b16 %v228
    %v950 = vunpack.c.l.b16 %v229
    %v951 = vunpack.c.h.b16 %v229
    %v952 = vunpack.c.l.b16 %v230
    %v953 = vunpack.c.h.b16 %v230
    %v954 = vunpack.c.l.b16 %v231
    %v955 = vunpack.c.h.b16 %v231
    %v956 = vunpack.c.l.b16 %v232
    %v957 = vunpack.c.h.b16 %v232
    %v958 = vunpack.c.l.b16 %v233
    %v959 = vunpack.c.h.b16 %v233
    %v960 = vunpack.c.l.b16 %v234
    %v961 = vunpack.c.h.b16 %v234
    %v962 = vunpack.c.l.b16 %v235
    %v963 = vunpack.c.h.b16 %v235
    %v964 = vunpack.c.l.b16 %v236
    %v965 = vunpack.c.h.b16 %v236
    %v966 = vunpack.c.l.b16 %v237
    %v967 = vunpack.c.h.b16 %v237
    %v968 = vunpack.c.l.b16 %v238
    %v969 = vunpack.c.h.b16 %v238
    %v970 = vunpack.c.l.b16 %v239
    %v971 = vunpack.c.h.b16 %v239
    %v972 = vunpack.c.l.b16 %v240
    %v973 = vunpack.c.h.b16 %v240
    %v974 = vunpack.c.l.b16 %v241
    %v975 = vunpack.c.h.b16 %v241
    %v976 = vunpack.c.l.b16 %v242
    %v977 = vunpack.c.h.b16 %v242
    %v978 = vunpack.c.l.b16 %v243
    %v979 = vunpack.c.h.b16 %v243
    %v980 = vunpack.c.l.b16 %v244
    %v981 = vunpack.c.h.b16 %v244
    %v982 = vunpack.c.l.b16 %v245
    %v983 = vunpack.c.h.b16 %v245
    %v984 = vunpack.c.l.b16 %v246
    %v985 = vunpack.c.h.b16 %v246
    %v986 = vunpack.c.l.b16 %v247
    %v987 = vunpack.c.h.b16 %v247
    %v988 = vunpack.c.l.b16 %v248
    %v989 = vunpack.c.h.b16 %v248
    %v990 = vunpack.c.l.b16 %v249
    %v991 = vunpack.c.h.b16 %v249
    %v992 = vunpack.c.l.b16 %v250
    %v993 = vunpack.c.h.b16 %v250
    %v994 = vunpack.c.l.b16 %v251
    %v995 = vunpack.c.h.b16 %v251
    %v996 = vunpack.c.l.b16 %v252
    %v997 = vunpack.c.h.b16 %v252
    %v998 = vunpack.c.l.b16 %v253
    %v999 = vunpack.c.h.b16 %v253
    %v1000 = vunpack.c.l.b16 %v254
    %v1001 = vunpack.c.h.b16 %v254
    %v1002 = vunpack.c.l.b16 %v255
    %v1003 = vunpack.c.h.b16 %v255
    %v1004 = vunpack.c.l.b16 %v256
    %v1005 = vunpack.c.h.b16 %v256
    %v1006 = vunpack.c.l.b16 %v257
    %v1007 = vunpack.c.h.b16 %v257
    %v1008 = vunpack.c.l.b16 %v258
    %v1009 = vunpack.c.h.b16 %v258
    %v1010 = vunpack.c.l.b16 %v259
    %v1011 = vunpack.c.h.b16 %v259
    %v1012 = vunpack.c.l.b16 %v260
    %v1013 = vunpack.c.h.b16 %v260
    %v1014 = vunpack.c.l.b16 %v261
    %v1015 = vunpack.c.h.b16 %v261
    %v1016 = vunpack.c.l.b16 %v262
    %v1017 = vunpack.c.h.b16 %v262
    %v1018 = vunpack.c.l.b16 %v263
    %v1019 = vunpack.c.h.b16 %v263
    %v1020 = vunpack.c.l.b16 %v264
    %v1021 = vunpack.c.h.b16 %v264
    %v1022 = vunpack.c.l.b16 %v265
    %v1023 = vunpack.c.h.b16 %v265
    %v1024 = vunpack.c.l.b16 %v266
    %v1025 = vunpack.c.h.b16 %v266
    %v1026 = vunpack.c.l.b16 %v267
    %v1027 = vunpack.c.h.b16 %v267
    %v1028 = vunpack.c.l.b16 %v268
    %v1029 = vunpack.c.h.b16 %v268
    %v1030 = vunpack.c.l.b16 %v269
    %v1031 = vunpack.c.h.b16 %v269
    %v1032 = vunpack.c.l.b16 %v270
    %v1033 = vunpack.c.h.b16 %v270
    %v1034 = vunpack.c.l.b16 %v271
    %v1035 = vunpack.c.h.b16 %v271
    %v1036 = vunpack.c.l.b16 %v272
    %v1037 = vunpack.c.h.b16 %v272
    %v1038 = vunpack.c.l.b16 %v273
    %v1039 = vunpack.c.h.b16 %v273
    %v1040 = vunpack.c.l.b16 %v274
    %v1041 = vunpack.c.h.b16 %v274
    %v1042 = vunpack.c.l.b16 %v275
    %v1043 = vunpack.c.h.b16 %v275
    %v1044 = vunpack.c.l.b16 %v276
    %v1045 = vunpack.c.h.b16 %v276
    %v1046 = vunpack.c.l.b16 %v277
    %v1047 = vunpack.c.h.b16 %v277
    %v1048 = vunpack.c.l.b16 %v278
    %v1049 = vunpack.c.h.b16 %v278
    %v1050 = vunpack.c.l.b16 %v279
    %v1051 = vunpack.c.h.b16 %v279
    %v1052 = vunpack.c.l.b16 %v280
    %v1053 = vunpack.c.h.b16 %v280
    %v1054 = vunpack.c.l.b16 %v281
    %v1055 = vunpack.c.h.b16 %v281
    %v1056 = vunpack.c.l.b16 %v282
    %v1057 = vunpack.c.h.b16 %v282
    %v1058 = vunpack.c.l.b16 %v283
    %v1059 = vunpack.c.h.b16 %v283
    %v1060 = vunpack.c.l.b16 %v284
    %v1061 = vunpack.c.h.b16 %v284
    %v1062 = vunpack.c.l.b16 %v285
    %v1063 = vunpack.c.h.b16 %v285
    %v1064 = vunpack.c.l.b16 %v286
    %v1065 = vunpack.c.h.b16 %v286
    %v1066 = vunpack.c.l.b16 %v287
    %v1067 = vunpack.c.h.b16 %v287
    %v1068 = vunpack.c.l.b16 %v288
    %v1069 = vunpack.c.h.b16 %v288
    %v1070 = vunpack.c.l.b16 %v289
    %v1071 = vunpack.c.h.b16 %v289
    %v1072 = vunpack.c.l.b16 %v290
    %v1073 = vunpack.c.h.b16 %v290
    %v1074 = vunpack.c.l.b16 %v291
    %v1075 = vunpack.c.h.b16 %v291
    %v1076 = vunpack.c.l.b16 %v292
    %v1077 = vunpack.c.h.b16 %v292
    %v1078 = vunpack.c.l.b16 %v293
    %v1079 = vunpack.c.h.b16 %v293
    %v1080 = vunpack.c.l.b16 %v294
    %v1081 = vunpack.c.h.b16 %v294
    %v1082 = vunpack.c.l.b16 %v295
    %v1083 = vunpack.c.h.b16 %v295
    %v1084 = vunpack.c.l.b16 %v296
    %v1085 = vunpack.c.h.b16 %v296
    %v1086 = vunpack.c.l.b16 %v297
    %v1087 = vunpack.c.h.b16 %v297
    %v1088 = vunpack.c.l.b16 %v298
    %v1089 = vunpack.c.h.b16 %v298
    %v1090 = vunpack.c.l.b16 %v299
    %v1091 = vunpack.c.h.b16 %v299
    %v1092 = vunpack.c.l.b16 %v300
    %v1093 = vunpack.c.h.b16 %v300
    %v1094 = vunpack.c.l.b16 %v301
    %v1095 = vunpack.c.h.b16 %v301
    %v1096 = vunpack.c.l.b16 %v302
    %v1097 = vunpack.c.h.b16 %v302
    %v1098 = vunpack.c.l.b16 %v303
    %v1099 = vunpack.c.h.b16 %v303
    %v1100 = vunpack.c.l.b16 %v304
    %v1101 = vunpack.c.h.b16 %v304
    %v1102 = vunpack.c.l.b16 %v305
    %v1103 = vunpack.c.h.b16 %v305
    %v1104 = vunpack.c.l.b16 %v306
    %v1105 = vunpack.c.h.b16 %v306
    %v1106 = vunpack.c.l.b16 %v307
    %v1107 = vunpack.c.h.b16 %v307
    %v1108 = vunpack.c.l.b16 %v308
    %v1109 = vunpack.c.h.b16 %v308
    %v1110 = vunpack.c.l.b16 %v309
    %v1111 = vunpack.c.h.b16 %v309
    %v1112 = vunpack.c.l.b16 %v310
    %v1113 = vunpack.c.h.b16 %v310
    %v1114 = vunpack.c.l.b16 %v311
    %v1115 = vunpack.c.h.b16 %v311
    %v1116 = vunpack.c.l.b16 %v312
    %v1117 = vunpack.c.h.b16 %v312
    %v1118 = vunpack.c.l.b16 %v313
    %v1119 = vunpack.c.h.b16 %v313
    %v1120 = vunpack.c.l.b16 %v314
    %v1121 = vunpack.c.h.b16 %v314
    %v1122 = vunpack.c.l.b16 %v315
    %v1123 = vunpack.c.h.b16 %v315
    %v1124 = vunpack.c.l.b16 %v316
    %v1125 = vunpack.c.h.b16 %v316
    %v1126 = vunpack.c.l.b16 %v317
    %v1127 = vunpack.c.h.b16 %v317
    %v1128 = vunpack.c.l.b16 %v318
    %v1129 = vunpack.c.h.b16 %v318
    %v1130 = vunpack.c.l.b16 %v319
    %v1131 = vunpack.c.h.b16 %v319
    %v1132 = vunpack.c.l.b16 %v320
    %v1133 = vunpack.c.h.b16 %v320
    %v1134 = vunpack.c.l.b16 %v321
    %v1135 = vunpack.c.h.b16 %v321
    %v1136 = vunpack.c.l.b16 %v322
    %v1137 = vunpack.c.h.b16 %v322
    %v1138 = vunpack.c.l.b16 %v323
    %v1139 = vunpack.c.h.b16 %v323
    %v1140 = vunpack.c.l.b16 %v324
    %v1141 = vunpack.c.h.b16 %v324
    %v1142 = vunpack.c.l.b16 %v325
    %v1143 = vunpack.c.h.b16 %v325
    %v1144 = vunpack.c.l.b16 %v326
    %v1145 = vunpack.c.h.b16 %v326
    %v1146 = vunpack.c.l.b16 %v327
    %v1147 = vunpack.c.h.b16 %v327
    %v1148 = vunpack.c.l.b16 %v328
    %v1149 = vunpack.c.h.b16 %v328
    %v1150 = vunpack.c.l.b16 %v329
    %v1151 = vunpack.c.h.b16 %v329
    %v1152 = vunpack.c.l.b16 %v330
    %v1153 = vunpack.c.h.b16 %v330
    %v1154 = vunpack.c.l.b16 %v331
    %v1155 = vunpack.c.h.b16 %v331
    %v1156 = vunpack.c.l.b16 %v332
    %v1157 = vunpack.c.h.b16 %v332
    %v1158 = vunpack.c.l.b16 %v333
    %v1159 = vunpack.c.h.b16 %v333
    %v1160 = vunpack.c.l.b16 %v334
    %v1161 = vunpack.c.h.b16 %v334
    %v1162 = vunpack.c.l.b16 %v335
    %v1163 = vunpack.c.h.b16 %v335
    %v1164 = vunpack.c.l.b16 %v336
    %v1165 = vunpack.c.h.b16 %v336
    %v1166 = vunpack.c.l.b16 %v337
    %v1167 = vunpack.c.h.b16 %v337
    %v1168 = vunpack.c.l.b16 %v338
    %v1169 = vunpack.c.h.b16 %v338
    %v1170 = vunpack.c.l.b16 %v339
    %v1171 = vunpack.c.h.b16 %v339
    %v1172 = vunpack.c.l.b16 %v340
    %v1173 = vunpack.c.h.b16 %v340
    %v1174 = vunpack.c.l.b16 %v341
    %v1175 = vunpack.c.h.b16 %v341
    %v1176 = vunpack.c.l.b16 %v342
    %v1177 = vunpack.c.h.b16 %v342
    %v1178 = vunpack.c.l.b16 %v343
    %v1179 = vunpack.c.h.b16 %v343
    %v1180 = vunpack.c.l.b16 %v344
    %v1181 = vunpack.c.h.b16 %v344
    %v1182 = vunpack.c.l.b16 %v345
    %v1183 = vunpack.c.h.b16 %v345
    %v1184 = vunpack.c.l.b16 %v346
    %v1185 = vunpack.c.h.b16 %v346
    %v1186 = vunpack.c.l.b16 %v347
    %v1187 = vunpack.c.h.b16 %v347
    %v1188 = vunpack.c.l.b16 %v348
    %v1189 = vunpack.c.h.b16 %v348
    %v1190 = vunpack.c.l.b16 %v349
    %v1191 = vunpack.c.h.b16 %v349
    %v1192 = vunpack.c.l.b16 %v350
    %v1193 = vunpack.c.h.b16 %v350
    %v1194 = vunpack.c.l.b16 %v351
    %v1195 = vunpack.c.h.b16 %v351
    %v1196 = vunpack.c.l.b16 %v352
    %v1197 = vunpack.c.h.b16 %v352
    %v1198 = vunpack.c.l.b16 %v353
    %v1199 = vunpack.c.h.b16 %v353
    %v1200 = vunpack.c.l.b16 %v354
    %v1201 = vunpack.c.h.b16 %v354
    %v1202 = vunpack.c.l.b16 %v355
    %v1203 = vunpack.c.h.b16 %v355
    %v1204 = vunpack.c.l.b16 %v356
    %v1205 = vunpack.c.h.b16 %v356
    %v1206 = vunpack.c.l.b16 %v357
    %v1207 = vunpack.c.h.b16 %v357
    %v1208 = vunpack.c.l.b16 %v358
    %v1209 = vunpack.c.h.b16 %v358
    %v1210 = vunpack.c.l.b16 %v359
    %v1211 = vunpack.c.h.b16 %v359
    %v1212 = vunpack.c.l.b16 %v360
    %v1213 = vunpack.c.h.b16 %v360
    %v1214 = vunpack.c.l.b16 %v361
    %v1215 = vunpack.c.h.b16 %v361
    %v1216 = vunpack.c.l.b16 %v362
    %v1217 = vunpack.c.h.b16 %v362
    %v1218 = vunpack.c.l.b16 %v363
    %v1219 = vunpack.c.h.b16 %v363
    %v1220 = vunpack.c.l.b16 %v364
    %v1221 = vunpack.c.h.b16 %v364
    %v1222 = vunpack.c.l.b16 %v365
    %v1223 = vunpack.c.h.b16 %v365
    %v1224 = vunpack.c.l.b16 %v366
    %v1225 = vunpack.c.h.b16 %v366
    %v1226 = vunpack.c.l.b16 %v367
    %v1227 = vunpack.c.h.b16 %v367
    %v1228 = vpack.c.b16 %v718, %v716
    %v1229 = vpack.c.b16 %v719, %v717
    %v1230 = vpack.c.b16 %v722, %v720
    %v1231 = vpack.c.b16 %v723, %v721
    %v1232 = vpack.c.b16 %v726, %v724
    %v1233 = vpack.c.b16 %v727, %v725
    %v1234 = vpack.c.b16 %v730, %v728
    %v1235 = vpack.c.b16 %v731, %v729
    %v1236 = vpack.c.b16 %v734, %v732
    %v1237 = vpack.c.b16 %v735, %v733
    %v1238 = vpack.c.b16 %v738, %v736
    %v1239 = vpack.c.b16 %v739, %v737
    %v1240 = vpack.c.b16 %v742, %v740
    %v1241 = vpack.c.b16 %v743, %v741
    %v1242 = vpack.c.b16 %v746, %v744
    %v1243 = vpack.c.b16 %v747, %v745
    %v1244 = vpack.c.b16 %v750, %v748
    %v1245 = vpack.c.b16 %v751, %v749
    %v1246 = vpack.c.b16 %v754, %v752
    %v1247 = vpack.c.b16 %v755, %v753
    %v1248 = vpack.c.b16 %v758, %v756
    %v1249 = vpack.c.b16 %v759, %v757
    %v1250 = vpack.c.b16 %v762, %v760
    %v1251 = vpack.c.b16 %v763, %v761
    %v1252 = vpack.c.b16 %v766, %v764
    %v1253 = vpack.c.b16 %v767, %v765
    %v1254 = vpack.c.b16 %v770, %v768
    %v1255 = vpack.c.b16 %v771, %v769
    %v1256 = vpack.c.b16 %v774, %v772
    %v1257 = vpack.c.b16 %v775, %v773
    %v1258 = vpack.c.b16 %v778, %v776
    %v1259 = vpack.c.b16 %v779, %v777
    %v1260 = vpack.c.b16 %v782, %v780
    %v1261 = vpack.c.b16 %v783, %v781
    %v1262 = vpack.c.b16 %v786, %v784
    %v1263 = vpack.c.b16 %v787, %v785
    %v1264 = vpack.c.b16 %v790, %v788
    %v1265 = vpack.c.b16 %v791, %v789
    %v1266 = vpack.c.b16 %v794, %v792
    %v1267 = vpack.c.b16 %v795, %v793
    %v1268 = vpack.c.b16 %v798, %v796
    %v1269 = vpack.c.b16 %v799, %v797
    %v1270 = vpack.c.b16 %v802, %v800
    %v1271 = vpack.c.b16 %v803, %v801
    %v1272 = vpack.c.b16 %v806, %v804
    %v1273 = vpack.c.b16 %v807, %v805
    %v1274 = vpack.c.b16 %v810, %v808
    %v1275 = vpack.c.b16 %v811, %v809
    %v1276 = vpack.c.b16 %v814, %v812
    %v1277 = vpack.c.b16 %v815, %v813
    %v1278 = vpack.c.b16 %v818, %v816
    %v1279 = vpack.c.b16 %v819, %v817
    %v1280 = vpack.c.b16 %v822, %v820
    %v1281 = vpack.c.b16 %v823, %v821
    %v1282 = vpack.c.b16 %v826, %v824
    %v1283 = vpack.c.b16 %v827, %v825
    %v1284 = vpack.c.b16 %v830, %v828
    %v1285 = vpack.c.b16 %v831, %v829
    %v1286 = vpack.c.b16 %v834, %v832
    %v1287 = vpack.c.b16 %v835, %v833
    %v1288 = vpack.c.b16 %v838, %v836
    %v1289 = vpack.c.b16 %v839, %v837
    %v1290 = vpack.c.b16 %v842, %v840
    %v1291 = vpack.c.b16 %v843, %v841
    %v1292 = vpack.c.b16 %v846, %v844
    %v1293 = vpack.c.b16 %v847, %v845
    %v1294 = vpack.c.b16 %v850, %v848
    %v1295 = vpack.c.b16 %v851, %v849
    %v1296 = vpack.c.b16 %v854, %v852
    %v1297 = vpack.c.b16 %v855, %v853
    %v1298 = vpack.c.b16 %v858, %v856
    %v1299 = vpack.c.b16 %v859, %v857
    %v1300 = vpack.c.b16 %v862, %v860
    %v1301 = vpack.c.b16 %v863, %v861
    %v1302 = vpack.c.b16 %v866, %v864
    %v1303 = vpack.c.b16 %v867, %v865
    %v1304 = vpack.c.b16 %v870, %v868
    %v1305 = vpack.c.b16 %v871, %v869
    %v1306 = vpack.c.b16 %v874, %v872
    %v1307 = vpack.c.b16 %v875, %v873
    %v1308 = vpack.c.b16 %v878, %v876
    %v1309 = vpack.c.b16 %v879, %v877
    %v1310 = vpack.c.b16 %v882, %v880
    %v1311 = vpack.c.b16 %v883, %v881
    %v1312 = vpack.c.b16 %v886, %v884
    %v1313 = vpack.c.b16 %v887, %v885
    %v1314 = vpack.c.b16 %v890, %v888
    %v1315 = vpack.c.b16 %v891, %v889
    %v1316 = vpack.c.b16 %v894, %v892
    %v1317 = vpack.c.b16 %v895, %v893
    %v1318 = vpack.c.b16 %v898, %v896
    %v1319 = vpack.c.b16 %v899, %v897
    %v1320 = vpack.c.b16 %v902, %v900
    %v1321 = vpack.c.b16 %v903, %v901
    %v1322 = vpack.c.b16 %v906, %v904
    %v1323 = vpack.c.b16 %v907, %v905
    %v1324 = vpack.c.b16 %v910, %v908
    %v1325 = vpack.c.b16 %v911, %v909
    %v1326 = vpack.c.b16 %v914, %v912
    %v1327 = vpack.c.b16 %v915, %v913
    %v1328 = vpack.c.b16 %v918, %v916
    %v1329 = vpack.c.b16 %v919, %v917
    %v1330 = vpack.c.b16 %v922, %v920
    %v1331 = vpack.c.b16 %v923, %v921
    %v1332 = vpack.c.b16 %v926, %v924
    %v1333 = vpack.c.b16 %v927, %v925
    %v1334 = vpack.c.b16 %v930, %v928
    %v1335 = vpack.c.b16 %v931, %v929
    %v1336 = vpack.c.b16 %v934, %v932
    %v1337 = vpack.c.b16 %v935, %v933
    %v1338 = vpack.c.b16 %v938, %v936
    %v1339 = vpack.c.b16 %v939, %v937
    %v1340 = vpack.c.b16 %v942, %v940
    %v1341 = vpack.c.b16 %v943, %v941
    %v1342 = vpack.c.b16 %v946, %v944
    %v1343 = vpack.c.b16 %v947, %v945
    %v1344 = vpack.c.b16 %v950, %v948
    %v1345 = vpack.c.b16 %v951, %v949
    %v1346 = vpack.c.b16 %v954, %v952
    %v1347 = vpack.c.b16 %v955, %v953
    %v1348 = vpack.c.b16 %v958, %v956
    %v1349 = vpack.c.b16 %v959, %v957
    %v1350 = vpack.c.b16 %v962, %v960
    %v1351 = vpack.c.b16 %v963, %v961
    %v1352 = vpack.c.b16 %v966, %v964
    %v1353 = vpack.c.b16 %v967, %v965
    %v1354 = vpack.c.b16 %v970, %v968
    %v1355 = vpack.c.b16 %v971, %v969
    %v1356 = vpack.c.b16 %v974, %v972
    %v1357 = vpack.c.b16 %v975, %v973
    %v1358 = vpack.c.b16 %v978, %v976
    %v1359 = vpack.c.b16 %v979, %v977
    %v1360 = vpack.c.b16 %v982, %v980
    %v1361 = vpack.c.b16 %v983, %v981
    %v1362 = vpack.c.b16 %v986, %v984
    %v1363 = vpack.c.b16 %v987, %v985
    %v1364 = vpack.c.b16 %v990, %v988
    %v1365 = vpack.c.b16 %v991, %v989
    %v1366 = vpack.c.b16 %v994, %v992
    %v1367 = vpack.c.b16 %v995, %v993
    %v1368 = vpack.c.b16 %v998, %v996
    %v1369 = vpack.c.b16 %v999, %v997
    %v1370 = vpack.c.b16 %v1002, %v1000
    %v1371 = vpack.c.b16 %v1003, %v1001
    %v1372 = vpack.c.b16 %v1006, %v1004
    %v1373 = vpack.c.b16 %v1007, %v1005
    %v1374 = vpack.c.b16 %v1010, %v1008
    %v1375 = vpack.c.b16 %v1011, %v1009
    %v1376 = vpack.c.b16 %v1014, %v1012
    %v1377 = vpack.c.b16 %v1015, %v1013
    %v1378 = vpack.c.b16 %v1018, %v1016
    %v1379 = vpack.c.b16 %v1019, %v1017
    %v1380 = vpack.c.b16 %v1022, %v1020
    %v1381 = vpack.c.b16 %v1023, %v1021
    %v1382 = vpack.c.b16 %v1026, %v1024
    %v1383 = vpack.c.b16 %v1027, %v1025
    %v1384 = vpack.c.b16 %v1030, %v1028
    %v1385 = vpack.c.b16 %v1031, %v1029
    %v1386 = vpack.c.b16 %v1034, %v1032
    %v1387 = vpack.c.b16 %v1035, %v1033
    %v1388 = vpack.c.b16 %v1038, %v1036
    %v1389 = vpack.c.b16 %v1039, %v1037
    %v1390 = vpack.c.b16 %v1042, %v1040
    %v1391 = vpack.c.b16 %v1043, %v1041
    %v1392 = vpack.c.b16 %v1046, %v1044
    %v1393 = vpack.c.b16 %v1047, %v1045
    %v1394 = vpack.c.b16 %v1050, %v1048
    %v1395 = vpack.c.b16 %v1051, %v1049
    %v1396 = vpack.c.b16 %v1054, %v1052
    %v1397 = vpack.c.b16 %v1055, %v1053
    %v1398 = vpack.c.b16 %v1058, %v1056
    %v1399 = vpack.c.b16 %v1059, %v1057
    %v1400 = vpack.c.b16 %v1062, %v1060
    %v1401 = vpack.c.b16 %v1063, %v1061
    %v1402 = vpack.c.b16 %v1066, %v1064
    %v1403 = vpack.c.b16 %v1067, %v1065
    %v1404 = vpack.c.b16 %v1070, %v1068
    %v1405 = vpack.c.b16 %v1071, %v1069
    %v1406 = vpack.c.b16 %v1074, %v1072
    %v1407 = vpack.c.b16 %v1075, %v1073
    %v1408 = vpack.c.b16 %v1078, %v1076
    %v1409 = vpack.c.b16 %v1079, %v1077
    %v1410 = vpack.c.b16 %v1082, %v1080
    %v1411 = vpack.c.b16 %v1083, %v1081
    %v1412 = vpack.c.b16 %v1086, %v1084
    %v1413 = vpack.c.b16 %v1087, %v1085
    %v1414 = vpack.c.b16 %v1090, %v1088
    %v1415 = vpack.c.b16 %v1091, %v1089
    %v1416 = vpack.c.b16 %v1094, %v1092
    %v1417 = vpack.c.b16 %v1095, %v1093
    %v1418 = vpack.c.b16 %v1098, %v1096
    %v1419 = vpack.c.b16 %v1099, %v1097
    %v1420 = vpack.c.b16 %v1102, %v1100
    %v1421 = vpack.c.b16 %v1103, %v1101
    %v1422 = vpack.c.b16 %v1106, %v1104
    %v1423 = vpack.c.b16 %v1107, %v1105
    %v1424 = vpack.c.b16 %v1110, %v1108
    %v1425 = vpack.c.b16 %v1111, %v1109
    %v1426 = vpack.c.b16 %v1114, %v1112
    %v1427 = vpack.c.b16 %v1115, %v1113
    %v1428 = vpack.c.b16 %v1118, %v1116
    %v1429 = vpack.c.b16 %v1119, %v1117
    %v1430 = vpack.c.b16 %v1122, %v1120
    %v1431 = vpack.c.b16 %v1123, %v1121
    %v1432 = vpack.c.b16 %v1126, %v1124
    %v1433 = vpack.c.b16 %v1127, %v1125
    %v1434 = vpack.c.b16 %v1130, %v1128
    %v1435 = vpack.c.b16 %v1131, %v1129
    %v1436 = vpack.c.b16 %v1134, %v1132
    %v1437 = vpack.c.b16 %v1135, %v1133
    %v1438 = vpack.c.b16 %v1138, %v1136
    %v1439 = vpack.c.b16 %v1139, %v1137
    %v1440 = vpack.c.b16 %v1142, %v1140
    %v1441 = vpack.c.b16 %v1143, %v1141
    %v1442 = vpack.c.b16 %v1146, %v1144
    %v1443 = vpack.c.b16 %v1147, %v1145
    %v1444 = vpack.c.b16 %v1150, %v1148
    %v1445 = vpack.c.b16 %v1151, %v1149
    %v1446 = vpack.c.b16 %v1154, %v1152
    %v1447 = vpack.c.b16 %v1155, %v1153
    %v1448 = vpack.c.b16 %v1158, %v1156
    %v1449 = vpack.c.b16 %v1159, %v1157
    %v1450 = vpack.c.b16 %v1162, %v1160
    %v1451 = vpack.c.b16 %v1163, %v1161
    %v1452 = vpack.c.b16 %v1166, %v1164
    %v1453 = vpack.c.b16 %v1167, %v1165
    %v1454 = vpack.c.b16 %v1170, %v1168
    %v1455 = vpack.c.b16 %v1171, %v1169
    %v1456 = vpack.c.b16 %v1174, %v1172
    %v1457 = vpack.c.b16 %v1175, %v1173
    %v1458 = vpack.c.b16 %v1178, %v1176
    %v1459 = vpack.c.b16 %v1179, %v1177
    %v1460 = vpack.c.b16 %v1182, %v1180
    %v1461 = vpack.c.b16 %v1183, %v1181
    %v1462 = vpack.c.b16 %v1186, %v1184
    %v1463 = vpack.c.b16 %v1187, %v1185
    %v1464 = vpack.c.b16 %v1190, %v1188
    %v1465 = vpack.c.b16 %v1191, %v1189
    %v1466 = vpack.c.b16 %v1194, %v1192
    %v1467 = vpack.c.b16 %v1195, %v1193
    %v1468 = vpack.c.b16 %v1198, %v1196
    %v1469 = vpack.c.b16 %v1199, %v1197
    %v1470 = vpack.c.b16 %v1202, %v1200
    %v1471 = vpack.c.b16 %v1203, %v1201
    %v1472 = vpack.c.b16 %v1206, %v1204
    %v1473 = vpack.c.b16 %v1207, %v1205
    %v1474 = vpack.c.b16 %v1210, %v1208
    %v1475 = vpack.c.b16 %v1211, %v1209
    %v1476 = vpack.c.b16 %v1214, %v1212
    %v1477 = vpack.c.b16 %v1215, %v1213
    %v1478 = vpack.c.b16 %v1218, %v1216
    %v1479 = vpack.c.b16 %v1219, %v1217
    %v1480 = vpack.c.b16 %v1222, %v1220
    %v1481 = vpack.c.b16 %v1223, %v1221
    %v1482 = vpack.c.b16 %v1226, %v1224
    %v1483 = vpack.c.b16 %v1227, %v1225
    %1740 = vmatprep.subr.bf16.mxu0 %v1229
    %1741 = vmatpush1.bf16.msra.mxu0 %v1228
    %1742 = vmatprep.subr.bf16.mxu0 %v1231
    %1743 = vmatpush1.bf16.msra.mxu0 %v1230
    %1744 = vmatprep.subr.bf16.mxu0 %v1233
    %1745 = vmatpush1.bf16.msra.mxu0 %v1232
    %1746 = vmatprep.subr.bf16.mxu0 %v1235
    %1747 = vmatpush1.bf16.msra.mxu0 %v1234
    %1748 = vmatprep.subr.bf16.mxu0 %v1237
    %1749 = vmatpush1.bf16.msra.mxu0 %v1236
    %1750 = vmatprep.subr.bf16.mxu0 %v1239
    %1751 = vmatpush1.bf16.msra.mxu0 %v1238
    %1752 = vmatprep.subr.bf16.mxu0 %v1241
    %1753 = vmatpush1.bf16.msra.mxu0 %v1240
    %1754 = vmatprep.subr.bf16.mxu0 %v1243
    %1755 = vmatpush1.bf16.msra.mxu0 %v1242
    %1756 = vmatprep.subr.bf16.mxu0 %v1245
    %1757 = vmatpush1.bf16.msra.mxu0 %v1244
    %1758 = vmatprep.subr.bf16.mxu0 %v1247
    %1759 = vmatpush1.bf16.msra.mxu0 %v1246
    %1760 = vmatprep.subr.bf16.mxu0 %v1249
    %1761 = vmatpush1.bf16.msra.mxu0 %v1248
    %1762 = vmatprep.subr.bf16.mxu0 %v1251
    %1763 = vmatpush1.bf16.msra.mxu0 %v1250
    %1764 = vmatprep.subr.bf16.mxu0 %v1253
    %1765 = vmatpush1.bf16.msra.mxu0 %v1252
    %1766 = vmatprep.subr.bf16.mxu0 %v1255
    %1767 = vmatpush1.bf16.msra.mxu0 %v1254
    %1768 = vmatprep.subr.bf16.mxu0 %v1257
    %1769 = vmatpush1.bf16.msra.mxu0 %v1256
    %1770 = vmatprep.subr.bf16.mxu0 %v1259
    %1771 = vmatpush1.bf16.msra.mxu0 %v1258
    %1772 = vmatprep.mubr.bf16.mxu0 %v429
    %1773 = vmatmul.mubr.bf16.gmra.mrb[0].mxu0 %v428
    %v1774 = vpop.f32.mrb[0].mxu0
    %v1775 = vadd.f32 %v373, %v1774
    %v1776 = vpop.f32.mrb[0].mxu0
    %v1777 = vadd.f32 %v377, %v1776
    %v1778 = vpop.f32.mrb[0].mxu0
    %v1779 = vadd.f32 %v373, %v1778
    %v1780 = vpop.f32.mrb[0].mxu0
    %v1781 = vadd.f32 %v377, %v1780
    %1782 = vdwg.mxu0
    %1783 = vmatprep.subr.bf16.mxu0 %v1261
    %1784 = vmatpush1.bf16.msra.mxu0 %v1260
    %1785 = vmatprep.subr.bf16.mxu0 %v1263
    %1786 = vmatpush1.bf16.msra.mxu0 %v1262
    %1787 = vmatprep.subr.bf16.mxu0 %v1265
    %1788 = vmatpush1.bf16.msra.mxu0 %v1264
    %1789 = vmatprep.subr.bf16.mxu0 %v1267
    %1790 = vmatpush1.bf16.msra.mxu0 %v1266
    %1791 = vmatprep.subr.bf16.mxu0 %v1269
    %1792 = vmatpush1.bf16.msra.mxu0 %v1268
    %1793 = vmatprep.subr.bf16.mxu0 %v1271
    %1794 = vmatpush1.bf16.msra.mxu0 %v1270
    %1795 = vmatprep.subr.bf16.mxu0 %v1273
    %1796 = vmatpush1.bf16.msra.mxu0 %v1272
    %1797 = vmatprep.subr.bf16.mxu0 %v1275
    %1798 = vmatpush1.bf16.msra.mxu0 %v1274
    %1799 = vmatprep.subr.bf16.mxu0 %v1277
    %1800 = vmatpush1.bf16.msra.mxu0 %v1276
    %1801 = vmatprep.subr.bf16.mxu0 %v1279
    %1802 = vmatpush1.bf16.msra.mxu0 %v1278
    %1803 = vmatprep.subr.bf16.mxu0 %v1281
    %1804 = vmatpush1.bf16.msra.mxu0 %v1280
    %1805 = vmatprep.subr.bf16.mxu0 %v1283
    %1806 = vmatpush1.bf16.msra.mxu0 %v1282
    %1807 = vmatprep.subr.bf16.mxu0 %v1285
    %1808 = vmatpush1.bf16.msra.mxu0 %v1284
    %1809 = vmatprep.subr.bf16.mxu0 %v1287
    %1810 = vmatpush1.bf16.msra.mxu0 %v1286
    %1811 = vmatprep.subr.bf16.mxu0 %v1289
    %1812 = vmatpush1.bf16.msra.mxu0 %v1288
    %1813 = vmatprep.subr.bf16.mxu0 %v1291
    %1814 = vmatpush1.bf16.msra.mxu0 %v1290
    %1815 = vmatprep.mubr.bf16.mxu0 %v431
    %1816 = vmatmul.mubr.bf16.gmra.mrb[0].mxu0 %v430
    %v1817 = vpop.f32.mrb[0].mxu0
    %v1818 = vadd.f32 %v1775, %v1817
    %v1819 = vpop.f32.mrb[0].mxu0
    %v1820 = vadd.f32 %v1777, %v1819
    %v1821 = vpop.f32.mrb[0].mxu0
    %v1822 = vadd.f32 %v1779, %v1821
    %v1823 = vpop.f32.mrb[0].mxu0
    %v1824 = vadd.f32 %v1781, %v1823
    %1825 = vdwg.mxu0
    %1826 = vmatprep.subr.bf16.mxu0 %v1293
    %1827 = vmatpush1.bf16.msra.mxu0 %v1292
    %1828 = vmatprep.subr.bf16.mxu0 %v1295
    %1829 = vmatpush1.bf16.msra.mxu0 %v1294
    %1830 = vmatprep.subr.bf16.mxu0 %v1297
    %1831 = vmatpush1.bf16.msra.mxu0 %v1296
    %1832 = vmatprep.subr.bf16.mxu0 %v1299
    %1833 = vmatpush1.bf16.msra.mxu0 %v1298
    %1834 = vmatprep.subr.bf16.mxu0 %v1301
    %1835 = vmatpush1.bf16.msra.mxu0 %v1300
    %1836 = vmatprep.subr.bf16.mxu0 %v1303
    %1837 = vmatpush1.bf16.msra.mxu0 %v1302
    %1838 = vmatprep.subr.bf16.mxu0 %v1305
    %1839 = vmatpush1.bf16.msra.mxu0 %v1304
    %1840 = vmatprep.subr.bf16.mxu0 %v1307
    %1841 = vmatpush1.bf16.msra.mxu0 %v1306
    %1842 = vmatprep.subr.bf16.mxu0 %v1309
    %1843 = vmatpush1.bf16.msra.mxu0 %v1308
    %1844 = vmatprep.subr.bf16.mxu0 %v1311
    %1845 = vmatpush1.bf16.msra.mxu0 %v1310
    %1846 = vmatprep.subr.bf16.mxu0 %v1313
    %1847 = vmatpush1.bf16.msra.mxu0 %v1312
    %1848 = vmatprep.subr.bf16.mxu0 %v1315
    %1849 = vmatpush1.bf16.msra.mxu0 %v1314
    %1850 = vmatprep.subr.bf16.mxu0 %v1317
    %1851 = vmatpush1.bf16.msra.mxu0 %v1316
    %1852 = vmatprep.subr.bf16.mxu0 %v1319
    %1853 = vmatpush1.bf16.msra.mxu0 %v1318
    %1854 = vmatprep.subr.bf16.mxu0 %v1321
    %1855 = vmatpush1.bf16.msra.mxu0 %v1320
    %1856 = vmatprep.subr.bf16.mxu0 %v1323
    %1857 = vmatpush1.bf16.msra.mxu0 %v1322
    %1858 = vmatprep.mubr.bf16.mxu0 %v433
    %1859 = vmatmul.mubr.bf16.gmra.mrb[0].mxu0 %v432
    %v1860 = vpop.f32.mrb[0].mxu0
    %v1861 = vadd.f32 %v1818, %v1860
    %v1862 = vpop.f32.mrb[0].mxu0
    %v1863 = vadd.f32 %v1820, %v1862
    %v1864 = vpop.f32.mrb[0].mxu0
    %v1865 = vadd.f32 %v1822, %v1864
    %v1866 = vpop.f32.mrb[0].mxu0
    %v1867 = vadd.f32 %v1824, %v1866
    %1868 = vdwg.mxu0
    %1869 = vmatprep.subr.bf16.mxu0 %v1325
    %1870 = vmatpush1.bf16.msra.mxu0 %v1324
    %1871 = vmatprep.subr.bf16.mxu0 %v1327
    %1872 = vmatpush1.bf16.msra.mxu0 %v1326
    %1873 = vmatprep.subr.bf16.mxu0 %v1329
    %1874 = vmatpush1.bf16.msra.mxu0 %v1328
    %1875 = vmatprep.subr.bf16.mxu0 %v1331
    %1876 = vmatpush1.bf16.msra.mxu0 %v1330
    %1877 = vmatprep.subr.bf16.mxu0 %v1333
    %1878 = vmatpush1.bf16.msra.mxu0 %v1332
    %1879 = vmatprep.subr.bf16.mxu0 %v1335
    %1880 = vmatpush1.bf16.msra.mxu0 %v1334
    %1881 = vmatprep.subr.bf16.mxu0 %v1337
    %1882 = vmatpush1.bf16.msra.mxu0 %v1336
    %1883 = vmatprep.subr.bf16.mxu0 %v1339
    %1884 = vmatpush1.bf16.msra.mxu0 %v1338
    %1885 = vmatprep.subr.bf16.mxu0 %v1341
    %1886 = vmatpush1.bf16.msra.mxu0 %v1340
    %1887 = vmatprep.subr.bf16.mxu0 %v1343
    %1888 = vmatpush1.bf16.msra.mxu0 %v1342
    %1889 = vmatprep.subr.bf16.mxu0 %v1345
    %1890 = vmatpush1.bf16.msra.mxu0 %v1344
    %1891 = vmatprep.subr.bf16.mxu0 %v1347
    %1892 = vmatpush1.bf16.msra.mxu0 %v1346
    %1893 = vmatprep.subr.bf16.mxu0 %v1349
    %1894 = vmatpush1.bf16.msra.mxu0 %v1348
    %1895 = vmatprep.subr.bf16.mxu0 %v1351
    %1896 = vmatpush1.bf16.msra.mxu0 %v1350
    %1897 = vmatprep.subr.bf16.mxu0 %v1353
    %1898 = vmatpush1.bf16.msra.mxu0 %v1352
    %1899 = vmatprep.subr.bf16.mxu0 %v1355
    %1900 = vmatpush1.bf16.msra.mxu0 %v1354
    %1901 = vmatprep.mubr.bf16.mxu0 %v435
    %1902 = vmatmul.mubr.bf16.gmra.mrb[0].mxu0 %v434
    %v1903 = vpop.f32.mrb[0].mxu0
    %v1904 = vadd.f32 %v1861, %v1903
    %v1905 = vpop.f32.mrb[0].mxu0
    %v1906 = vadd.f32 %v1863, %v1905
    %v1907 = vpop.f32.mrb[0].mxu0
    %v1908 = vadd.f32 %v1865, %v1907
    %v1909 = vpop.f32.mrb[0].mxu0
    %v1910 = vadd.f32 %v1867, %v1909
    %1911 = vdwg.mxu0
    %1912 = vmatprep.subr.bf16.mxu0 %v1357
    %1913 = vmatpush1.bf16.msra.mxu0 %v1356
    %1914 = vmatprep.subr.bf16.mxu0 %v1359
    %1915 = vmatpush1.bf16.msra.mxu0 %v1358
    %1916 = vmatprep.subr.bf16.mxu0 %v1361
    %1917 = vmatpush1.bf16.msra.mxu0 %v1360
    %1918 = vmatprep.subr.bf16.mxu0 %v1363
    %1919 = vmatpush1.bf16.msra.mxu0 %v1362
    %1920 = vmatprep.subr.bf16.mxu0 %v1365
    %1921 = vmatpush1.bf16.msra.mxu0 %v1364
    %1922 = vmatprep.subr.bf16.mxu0 %v1367
    %1923 = vmatpush1.bf16.msra.mxu0 %v1366
    %1924 = vmatprep.subr.bf16.mxu0 %v1369
    %1925 = vmatpush1.bf16.msra.mxu0 %v1368
    %1926 = vmatprep.subr.bf16.mxu0 %v1371
    %1927 = vmatpush1.bf16.msra.mxu0 %v1370
    %1928 = vmatprep.subr.bf16.mxu0 %v1373
    %1929 = vmatpush1.bf16.msra.mxu0 %v1372
    %1930 = vmatprep.subr.bf16.mxu0 %v1375
    %1931 = vmatpush1.bf16.msra.mxu0 %v1374
    %1932 = vmatprep.subr.bf16.mxu0 %v1377
    %1933 = vmatpush1.bf16.msra.mxu0 %v1376
    %1934 = vmatprep.subr.bf16.mxu0 %v1379
    %1935 = vmatpush1.bf16.msra.mxu0 %v1378
    %1936 = vmatprep.subr.bf16.mxu0 %v1381
    %1937 = vmatpush1.bf16.msra.mxu0 %v1380
    %1938 = vmatprep.subr.bf16.mxu0 %v1383
    %1939 = vmatpush1.bf16.msra.mxu0 %v1382
    %1940 = vmatprep.subr.bf16.mxu0 %v1385
    %1941 = vmatpush1.bf16.msra.mxu0 %v1384
    %1942 = vmatprep.subr.bf16.mxu0 %v1387
    %1943 = vmatpush1.bf16.msra.mxu0 %v1386
    %1944 = vmatprep.mubr.bf16.mxu0 %v437
    %1945 = vmatmul.mubr.bf16.gmra.mrb[0].mxu0 %v436
    %v1946 = vpop.f32.mrb[0].mxu0
    %v1947 = vadd.f32 %v1904, %v1946
    %v1948 = vpop.f32.mrb[0].mxu0
    %v1949 = vadd.f32 %v1906, %v1948
    %v1950 = vpop.f32.mrb[0].mxu0
    %v1951 = vadd.f32 %v1908, %v1950
    %v1952 = vpop.f32.mrb[0].mxu0
    %v1953 = vadd.f32 %v1910, %v1952
    %1954 = vdwg.mxu0
    %1955 = vmatprep.subr.bf16.mxu0 %v1389
    %1956 = vmatpush1.bf16.msra.mxu0 %v1388
    %1957 = vmatprep.subr.bf16.mxu0 %v1391
    %1958 = vmatpush1.bf16.msra.mxu0 %v1390
    %1959 = vmatprep.subr.bf16.mxu0 %v1393
    %1960 = vmatpush1.bf16.msra.mxu0 %v1392
    %1961 = vmatprep.subr.bf16.mxu0 %v1395
    %1962 = vmatpush1.bf16.msra.mxu0 %v1394
    %1963 = vmatprep.subr.bf16.mxu0 %v1397
    %1964 = vmatpush1.bf16.msra.mxu0 %v1396
    %1965 = vmatprep.subr.bf16.mxu0 %v1399
    %1966 = vmatpush1.bf16.msra.mxu0 %v1398
    %1967 = vmatprep.subr.bf16.mxu0 %v1401
    %1968 = vmatpush1.bf16.msra.mxu0 %v1400
    %1969 = vmatprep.subr.bf16.mxu0 %v1403
    %1970 = vmatpush1.bf16.msra.mxu0 %v1402
    %1971 = vmatprep.subr.bf16.mxu0 %v1405
    %1972 = vmatpush1.bf16.msra.mxu0 %v1404
    %1973 = vmatprep.subr.bf16.mxu0 %v1407
    %1974 = vmatpush1.bf16.msra.mxu0 %v1406
    %1975 = vmatprep.subr.bf16.mxu0 %v1409
    %1976 = vmatpush1.bf16.msra.mxu0 %v1408
    %1977 = vmatprep.subr.bf16.mxu0 %v1411
    %1978 = vmatpush1.bf16.msra.mxu0 %v1410
    %1979 = vmatprep.subr.bf16.mxu0 %v1413
    %1980 = vmatpush1.bf16.msra.mxu0 %v1412
    %1981 = vmatprep.subr.bf16.mxu0 %v1415
    %1982 = vmatpush1.bf16.msra.mxu0 %v1414
    %1983 = vmatprep.subr.bf16.mxu0 %v1417
    %1984 = vmatpush1.bf16.msra.mxu0 %v1416
    %1985 = vmatprep.subr.bf16.mxu0 %v1419
    %1986 = vmatpush1.bf16.msra.mxu0 %v1418
    %1987 = vmatprep.mubr.bf16.mxu0 %v439
    %1988 = vmatmul.mubr.bf16.gmra.mrb[0].mxu0 %v438
    %v1989 = vpop.f32.mrb[0].mxu0
    %v1990 = vadd.f32 %v1947, %v1989
    %v1991 = vpop.f32.mrb[0].mxu0
    %v1992 = vadd.f32 %v1949, %v1991
    %v1993 = vpop.f32.mrb[0].mxu0
    %v1994 = vadd.f32 %v1951, %v1993
    %v1995 = vpop.f32.mrb[0].mxu0
    %v1996 = vadd.f32 %v1953, %v1995
    %1997 = vdwg.mxu0
    %1998 = vmatprep.subr.bf16.mxu0 %v1421
    %1999 = vmatpush1.bf16.msra.mxu0 %v1420
    %2000 = vmatprep.subr.bf16.mxu0 %v1423
    %2001 = vmatpush1.bf16.msra.mxu0 %v1422
    %2002 = vmatprep.subr.bf16.mxu0 %v1425
    %2003 = vmatpush1.bf16.msra.mxu0 %v1424
    %2004 = vmatprep.subr.bf16.mxu0 %v1427
    %2005 = vmatpush1.bf16.msra.mxu0 %v1426
    %2006 = vmatprep.subr.bf16.mxu0 %v1429
    %2007 = vmatpush1.bf16.msra.mxu0 %v1428
    %2008 = vmatprep.subr.bf16.mxu0 %v1431
    %2009 = vmatpush1.bf16.msra.mxu0 %v1430
    %2010 = vmatprep.subr.bf16.mxu0 %v1433
    %2011 = vmatpush1.bf16.msra.mxu0 %v1432
    %2012 = vmatprep.subr.bf16.mxu0 %v1435
    %2013 = vmatpush1.bf16.msra.mxu0 %v1434
    %2014 = vmatprep.subr.bf16.mxu0 %v1437
    %2015 = vmatpush1.bf16.msra.mxu0 %v1436
    %2016 = vmatprep.subr.bf16.mxu0 %v1439
    %2017 = vmatpush1.bf16.msra.mxu0 %v1438
    %2018 = vmatprep.subr.bf16.mxu0 %v1441
    %2019 = vmatpush1.bf16.msra.mxu0 %v1440
    %2020 = vmatprep.subr.bf16.mxu0 %v1443
    %2021 = vmatpush1.bf16.msra.mxu0 %v1442
    %2022 = vmatprep.subr.bf16.mxu0 %v1445
    %2023 = vmatpush1.bf16.msra.mxu0 %v1444
    %2024 = vmatprep.subr.bf16.mxu0 %v1447
    %2025 = vmatpush1.bf16.msra.mxu0 %v1446
    %2026 = vmatprep.subr.bf16.mxu0 %v1449
    %2027 = vmatpush1.bf16.msra.mxu0 %v1448
    %2028 = vmatprep.subr.bf16.mxu0 %v1451
    %2029 = vmatpush1.bf16.msra.mxu0 %v1450
    %2030 = vmatprep.mubr.bf16.mxu0 %v441
    %2031 = vmatmul.mubr.bf16.gmra.mrb[0].mxu0 %v440
    %v2032 = vpop.f32.mrb[0].mxu0
    %v2033 = vadd.f32 %v1990, %v2032
    %v2034 = vpop.f32.mrb[0].mxu0
    %v2035 = vadd.f32 %v1992, %v2034
    %v2036 = vpop.f32.mrb[0].mxu0
    %v2037 = vadd.f32 %v1994, %v2036
    %v2038 = vpop.f32.mrb[0].mxu0
    %v2039 = vadd.f32 %v1996, %v2038
    %2040 = vdwg.mxu0
    %2041 = vmatprep.subr.bf16.mxu0 %v1453
    %2042 = vmatpush1.bf16.msra.mxu0 %v1452
    %2043 = vmatprep.subr.bf16.mxu0 %v1455
    %2044 = vmatpush1.bf16.msra.mxu0 %v1454
    %2045 = vmatprep.subr.bf16.mxu0 %v1457
    %2046 = vmatpush1.bf16.msra.mxu0 %v1456
    %2047 = vmatprep.subr.bf16.mxu0 %v1459
    %2048 = vmatpush1.bf16.msra.mxu0 %v1458
    %2049 = vmatprep.subr.bf16.mxu0 %v1461
    %2050 = vmatpush1.bf16.msra.mxu0 %v1460
    %2051 = vmatprep.subr.bf16.mxu0 %v1463
    %2052 = vmatpush1.bf16.msra.mxu0 %v1462
    %2053 = vmatprep.subr.bf16.mxu0 %v1465
    %2054 = vmatpush1.bf16.msra.mxu0 %v1464
    %2055 = vmatprep.subr.bf16.mxu0 %v1467
    %2056 = vmatpush1.bf16.msra.mxu0 %v1466
    %2057 = vmatprep.subr.bf16.mxu0 %v1469
    %2058 = vmatpush1.bf16.msra.mxu0 %v1468
    %2059 = vmatprep.subr.bf16.mxu0 %v1471
    %2060 = vmatpush1.bf16.msra.mxu0 %v1470
    %2061 = vmatprep.subr.bf16.mxu0 %v1473
    %2062 = vmatpush1.bf16.msra.mxu0 %v1472
    %2063 = vmatprep.subr.bf16.mxu0 %v1475
    %2064 = vmatpush1.bf16.msra.mxu0 %v1474
    %2065 = vmatprep.subr.bf16.mxu0 %v1477
    %2066 = vmatpush1.bf16.msra.mxu0 %v1476
    %2067 = vmatprep.subr.bf16.mxu0 %v1479
    %2068 = vmatpush1.bf16.msra.mxu0 %v1478
    %2069 = vmatprep.subr.bf16.mxu0 %v1481
    %2070 = vmatpush1.bf16.msra.mxu0 %v1480
    %2071 = vmatprep.subr.bf16.mxu0 %v1483
    %2072 = vmatpush1.bf16.msra.mxu0 %v1482
    %2073 = vmatprep.mubr.bf16.mxu0 %v443
    %2074 = vmatmul.mubr.bf16.gmra.mrb[0].mxu0 %v442
    %v2075 = vpop.f32.mrb[0].mxu0
    %v2076 = vadd.f32 %v2033, %v2075
    %v2077 = vpop.f32.mrb[0].mxu0
    %v2078 = vadd.f32 %v2035, %v2077
    %v2079 = vpop.f32.mrb[0].mxu0
    %v2080 = vadd.f32 %v2037, %v2079
    %v2081 = vpop.f32.mrb[0].mxu0
    %v2082 = vadd.f32 %v2039, %v2081
    %2083 = vdwg.mxu0
    %v2100 = vunpack.c.l.b16 %v96
    %v2101 = vunpack.c.h.b16 %v96
    %v2102 = vunpack.c.l.b16 %v97
    %v2103 = vunpack.c.h.b16 %v97
    %v2104 = vunpack.c.l.b16 %v98
    %v2105 = vunpack.c.h.b16 %v98
    %v2106 = vunpack.c.l.b16 %v99
    %v2107 = vunpack.c.h.b16 %v99
    %v2108 = vunpack.c.l.b16 %v100
    %v2109 = vunpack.c.h.b16 %v100
    %v2110 = vunpack.c.l.b16 %v101
    %v2111 = vunpack.c.h.b16 %v101
    %v2112 = vunpack.c.l.b16 %v102
    %v2113 = vunpack.c.h.b16 %v102
    %v2114 = vunpack.c.l.b16 %v103
    %v2115 = vunpack.c.h.b16 %v103
    %v2116 = vunpack.c.l.b16 %v104
    %v2117 = vunpack.c.h.b16 %v104
    %v2118 = vunpack.c.l.b16 %v105
    %v2119 = vunpack.c.h.b16 %v105
    %v2120 = vunpack.c.l.b16 %v106
    %v2121 = vunpack.c.h.b16 %v106
    %v2122 = vunpack.c.l.b16 %v107
    %v2123 = vunpack.c.h.b16 %v107
    %v2124 = vunpack.c.l.b16 %v108
    %v2125 = vunpack.c.h.b16 %v108
    %v2126 = vunpack.c.l.b16 %v109
    %v2127 = vunpack.c.h.b16 %v109
    %v2128 = vunpack.c.l.b16 %v110
    %v2129 = vunpack.c.h.b16 %v110
    %v2130 = vunpack.c.l.b16 %v111
    %v2131 = vunpack.c.h.b16 %v111
    %v2132 = vpack.c.b16 %v2116, %v2100
    %v2133 = vpack.c.b16 %v2117, %v2101
    %v2134 = vpack.c.b16 %v2118, %v2102
    %v2135 = vpack.c.b16 %v2119, %v2103
    %v2136 = vpack.c.b16 %v2120, %v2104
    %v2137 = vpack.c.b16 %v2121, %v2105
    %v2138 = vpack.c.b16 %v2122, %v2106
    %v2139 = vpack.c.b16 %v2123, %v2107
    %v2140 = vpack.c.b16 %v2124, %v2108
    %v2141 = vpack.c.b16 %v2125, %v2109
    %v2142 = vpack.c.b16 %v2126, %v2110
    %v2143 = vpack.c.b16 %v2127, %v2111
    %v2144 = vpack.c.b16 %v2128, %v2112
    %v2145 = vpack.c.b16 %v2129, %v2113
    %v2146 = vpack.c.b16 %v2130, %v2114
    %v2147 = vpack.c.b16 %v2131, %v2115
    %2164 = vmatprep.subr.bf16.mxu0 %v1229
    %2165 = vmatpush1.bf16.msra.mxu0 %v1228
    %2166 = vmatprep.subr.bf16.mxu0 %v1231
    %2167 = vmatpush1.bf16.msra.mxu0 %v1230
    %2168 = vmatprep.subr.bf16.mxu0 %v1233
    %2169 = vmatpush1.bf16.msra.mxu0 %v1232
    %2170 = vmatprep.subr.bf16.mxu0 %v1235
    %2171 = vmatpush1.bf16.msra.mxu0 %v1234
    %2172 = vmatprep.subr.bf16.mxu0 %v1237
    %2173 = vmatpush1.bf16.msra.mxu0 %v1236
    %2174 = vmatprep.subr.bf16.mxu0 %v1239
    %2175 = vmatpush1.bf16.msra.mxu0 %v1238
    %2176 = vmatprep.subr.bf16.mxu0 %v1241
    %2177 = vmatpush1.bf16.msra.mxu0 %v1240
    %2178 = vmatprep.subr.bf16.mxu0 %v1243
    %2179 = vmatpush1.bf16.msra.mxu0 %v1242
    %2180 = vmatprep.subr.bf16.mxu0 %v1245
    %2181 = vmatpush1.bf16.msra.mxu0 %v1244
    %2182 = vmatprep.subr.bf16.mxu0 %v1247
    %2183 = vmatpush1.bf16.msra.mxu0 %v1246
    %2184 = vmatprep.subr.bf16.mxu0 %v1249
    %2185 = vmatpush1.bf16.msra.mxu0 %v1248
    %2186 = vmatprep.subr.bf16.mxu0 %v1251
    %2187 = vmatpush1.bf16.msra.mxu0 %v1250
    %2188 = vmatprep.subr.bf16.mxu0 %v1253
    %2189 = vmatpush1.bf16.msra.mxu0 %v1252
    %2190 = vmatprep.subr.bf16.mxu0 %v1255
    %2191 = vmatpush1.bf16.msra.mxu0 %v1254
    %2192 = vmatprep.subr.bf16.mxu0 %v1257
    %2193 = vmatpush1.bf16.msra.mxu0 %v1256
    %2194 = vmatprep.subr.bf16.mxu0 %v1259
    %2195 = vmatpush1.bf16.msra.mxu0 %v1258
    %2196 = vmatprep.mubr.bf16.mxu0 %v2133
    %2197 = vmatmul.mubr.bf16.gmra.mrb[0].mxu0 %v2132
    %v2198 = vpop.f32.mrb[0].mxu0
    %v2199 = vadd.f32 %v373, %v2198
    %v2200 = vpop.f32.mrb[0].mxu0
    %v2201 = vadd.f32 %v377, %v2200
    %v2202 = vpop.f32.mrb[0].mxu0
    %v2203 = vadd.f32 %v373, %v2202
    %v2204 = vpop.f32.mrb[0].mxu0
    %v2205 = vadd.f32 %v377, %v2204
    %2206 = vdwg.mxu0
    %2207 = vmatprep.subr.bf16.mxu0 %v1261
    %2208 = vmatpush1.bf16.msra.mxu0 %v1260
    %2209 = vmatprep.subr.bf16.mxu0 %v1263
    %2210 = vmatpush1.bf16.msra.mxu0 %v1262
    %2211 = vmatprep.subr.bf16.mxu0 %v1265
    %2212 = vmatpush1.bf16.msra.mxu0 %v1264
    %2213 = vmatprep.subr.bf16.mxu0 %v1267
    %2214 = vmatpush1.bf16.msra.mxu0 %v1266
    %2215 = vmatprep.subr.bf16.mxu0 %v1269
    %2216 = vmatpush1.bf16.msra.mxu0 %v1268
    %2217 = vmatprep.subr.bf16.mxu0 %v1271
    %2218 = vmatpush1.bf16.msra.mxu0 %v1270
    %2219 = vmatprep.subr.bf16.mxu0 %v1273
    %2220 = vmatpush1.bf16.msra.mxu0 %v1272
    %2221 = vmatprep.subr.bf16.mxu0 %v1275
    %2222 = vmatpush1.bf16.msra.mxu0 %v1274
    %2223 = vmatprep.subr.bf16.mxu0 %v1277
    %2224 = vmatpush1.bf16.msra.mxu0 %v1276
    %2225 = vmatprep.subr.bf16.mxu0 %v1279
    %2226 = vmatpush1.bf16.msra.mxu0 %v1278
    %2227 = vmatprep.subr.bf16.mxu0 %v1281
    %2228 = vmatpush1.bf16.msra.mxu0 %v1280
    %2229 = vmatprep.subr.bf16.mxu0 %v1283
    %2230 = vmatpush1.bf16.msra.mxu0 %v1282
    %2231 = vmatprep.subr.bf16.mxu0 %v1285
    %2232 = vmatpush1.bf16.msra.mxu0 %v1284
    %2233 = vmatprep.subr.bf16.mxu0 %v1287
    %2234 = vmatpush1.bf16.msra.mxu0 %v1286
    %2235 = vmatprep.subr.bf16.mxu0 %v1289
    %2236 = vmatpush1.bf16.msra.mxu0 %v1288
    %2237 = vmatprep.subr.bf16.mxu0 %v1291
    %2238 = vmatpush1.bf16.msra.mxu0 %v1290
    %2239 = vmatprep.mubr.bf16.mxu0 %v2135
    %2240 = vmatmul.mubr.bf16.gmra.mrb[0].mxu0 %v2134
    %v2241 = vpop.f32.mrb[0].mxu0
    %v2242 = vadd.f32 %v2199, %v2241
    %v2243 = vpop.f32.mrb[0].mxu0
    %v2244 = vadd.f32 %v2201, %v2243
    %v2245 = vpop.f32.mrb[0].mxu0
    %v2246 = vadd.f32 %v2203, %v2245
    %v2247 = vpop.f32.mrb[0].mxu0
    %v2248 = vadd.f32 %v2205, %v2247
    %2249 = vdwg.mxu0
    %2250 = vmatprep.subr.bf16.mxu0 %v1293
    %2251 = vmatpush1.bf16.msra.mxu0 %v1292
    %2252 = vmatprep.subr.bf16.mxu0 %v1295
    %2253 = vmatpush1.bf16.msra.mxu0 %v1294
    %2254 = vmatprep.subr.bf16.mxu0 %v1297
    %2255 = vmatpush1.bf16.msra.mxu0 %v1296
    %2256 = vmatprep.subr.bf16.mxu0 %v1299
    %2257 = vmatpush1.bf16.msra.mxu0 %v1298
    %2258 = vmatprep.subr.bf16.mxu0 %v1301
    %2259 = vmatpush1.bf16.msra.mxu0 %v1300
    %2260 = vmatprep.subr.bf16.mxu0 %v1303
    %2261 = vmatpush1.bf16.msra.mxu0 %v1302
    %2262 = vmatprep.subr.bf16.mxu0 %v1305
    %2263 = vmatpush1.bf16.msra.mxu0 %v1304
    %2264 = vmatprep.subr.bf16.mxu0 %v1307
    %2265 = vmatpush1.bf16.msra.mxu0 %v1306
    %2266 = vmatprep.subr.bf16.mxu0 %v1309
    %2267 = vmatpush1.bf16.msra.mxu0 %v1308
    %2268 = vmatprep.subr.bf16.mxu0 %v1311
    %2269 = vmatpush1.bf16.msra.mxu0 %v1310
    %2270 = vmatprep.subr.bf16.mxu0 %v1313
    %2271 = vmatpush1.bf16.msra.mxu0 %v1312
    %2272 = vmatprep.subr.bf16.mxu0 %v1315
    %2273 = vmatpush1.bf16.msra.mxu0 %v1314
    %2274 = vmatprep.subr.bf16.mxu0 %v1317
    %2275 = vmatpush1.bf16.msra.mxu0 %v1316
    %2276 = vmatprep.subr.bf16.mxu0 %v1319
    %2277 = vmatpush1.bf16.msra.mxu0 %v1318
    %2278 = vmatprep.subr.bf16.mxu0 %v1321
    %2279 = vmatpush1.bf16.msra.mxu0 %v1320
    %2280 = vmatprep.subr.bf16.mxu0 %v1323
    %2281 = vmatpush1.bf16.msra.mxu0 %v1322
    %2282 = vmatprep.mubr.bf16.mxu0 %v2137
    %2283 = vmatmul.mubr.bf16.gmra.mrb[0].mxu0 %v2136
    %v2284 = vpop.f32.mrb[0].mxu0
    %v2285 = vadd.f32 %v2242, %v2284
    %v2286 = vpop.f32.mrb[0].mxu0
    %v2287 = vadd.f32 %v2244, %v2286
    %v2288 = vpop.f32.mrb[0].mxu0
    %v2289 = vadd.f32 %v2246, %v2288
    %v2290 = vpop.f32.mrb[0].mxu0
    %v2291 = vadd.f32 %v2248, %v2290
    %2292 = vdwg.mxu0
    %2293 = vmatprep.subr.bf16.mxu0 %v1325
    %2294 = vmatpush1.bf16.msra.mxu0 %v1324
    %2295 = vmatprep.subr.bf16.mxu0 %v1327
    %2296 = vmatpush1.bf16.msra.mxu0 %v1326
    %2297 = vmatprep.subr.bf16.mxu0 %v1329
    %2298 = vmatpush1.bf16.msra.mxu0 %v1328
    %2299 = vmatprep.subr.bf16.mxu0 %v1331
    %2300 = vmatpush1.bf16.msra.mxu0 %v1330
    %2301 = vmatprep.subr.bf16.mxu0 %v1333
    %2302 = vmatpush1.bf16.msra.mxu0 %v1332
    %2303 = vmatprep.subr.bf16.mxu0 %v1335
    %2304 = vmatpush1.bf16.msra.mxu0 %v1334
    %2305 = vmatprep.subr.bf16.mxu0 %v1337
    %2306 = vmatpush1.bf16.msra.mxu0 %v1336
    %2307 = vmatprep.subr.bf16.mxu0 %v1339
    %2308 = vmatpush1.bf16.msra.mxu0 %v1338
    %2309 = vmatprep.subr.bf16.mxu0 %v1341
    %2310 = vmatpush1.bf16.msra.mxu0 %v1340
    %2311 = vmatprep.subr.bf16.mxu0 %v1343
    %2312 = vmatpush1.bf16.msra.mxu0 %v1342
    %2313 = vmatprep.subr.bf16.mxu0 %v1345
    %2314 = vmatpush1.bf16.msra.mxu0 %v1344
    %2315 = vmatprep.subr.bf16.mxu0 %v1347
    %2316 = vmatpush1.bf16.msra.mxu0 %v1346
    %2317 = vmatprep.subr.bf16.mxu0 %v1349
    %2318 = vmatpush1.bf16.msra.mxu0 %v1348
    %2319 = vmatprep.subr.bf16.mxu0 %v1351
    %2320 = vmatpush1.bf16.msra.mxu0 %v1350
    %2321 = vmatprep.subr.bf16.mxu0 %v1353
    %2322 = vmatpush1.bf16.msra.mxu0 %v1352
    %2323 = vmatprep.subr.bf16.mxu0 %v1355
    %2324 = vmatpush1.bf16.msra.mxu0 %v1354
    %2325 = vmatprep.mubr.bf16.mxu0 %v2139
    %2326 = vmatmul.mubr.bf16.gmra.mrb[0].mxu0 %v2138
    %v2327 = vpop.f32.mrb[0].mxu0
    %v2328 = vadd.f32 %v2285, %v2327
    %v2329 = vpop.f32.mrb[0].mxu0
    %v2330 = vadd.f32 %v2287, %v2329
    %v2331 = vpop.f32.mrb[0].mxu0
    %v2332 = vadd.f32 %v2289, %v2331
    %v2333 = vpop.f32.mrb[0].mxu0
    %v2334 = vadd.f32 %v2291, %v2333
    %2335 = vdwg.mxu0
    %2336 = vmatprep.subr.bf16.mxu0 %v1357
    %2337 = vmatpush1.bf16.msra.mxu0 %v1356
    %2338 = vmatprep.subr.bf16.mxu0 %v1359
    %2339 = vmatpush1.bf16.msra.mxu0 %v1358
    %2340 = vmatprep.subr.bf16.mxu0 %v1361
    %2341 = vmatpush1.bf16.msra.mxu0 %v1360
    %2342 = vmatprep.subr.bf16.mxu0 %v1363
    %2343 = vmatpush1.bf16.msra.mxu0 %v1362
    %2344 = vmatprep.subr.bf16.mxu0 %v1365
    %2345 = vmatpush1.bf16.msra.mxu0 %v1364
    %2346 = vmatprep.subr.bf16.mxu0 %v1367
    %2347 = vmatpush1.bf16.msra.mxu0 %v1366
    %2348 = vmatprep.subr.bf16.mxu0 %v1369
    %2349 = vmatpush1.bf16.msra.mxu0 %v1368
    %2350 = vmatprep.subr.bf16.mxu0 %v1371
    %2351 = vmatpush1.bf16.msra.mxu0 %v1370
    %2352 = vmatprep.subr.bf16.mxu0 %v1373
    %2353 = vmatpush1.bf16.msra.mxu0 %v1372
    %2354 = vmatprep.subr.bf16.mxu0 %v1375
    %2355 = vmatpush1.bf16.msra.mxu0 %v1374
    %2356 = vmatprep.subr.bf16.mxu0 %v1377
    %2357 = vmatpush1.bf16.msra.mxu0 %v1376
    %2358 = vmatprep.subr.bf16.mxu0 %v1379
    %2359 = vmatpush1.bf16.msra.mxu0 %v1378
    %2360 = vmatprep.subr.bf16.mxu0 %v1381
    %2361 = vmatpush1.bf16.msra.mxu0 %v1380
    %2362 = vmatprep.subr.bf16.mxu0 %v1383
    %2363 = vmatpush1.bf16.msra.mxu0 %v1382
    %2364 = vmatprep.subr.bf16.mxu0 %v1385
    %2365 = vmatpush1.bf16.msra.mxu0 %v1384
    %2366 = vmatprep.subr.bf16.mxu0 %v1387
    %2367 = vmatpush1.bf16.msra.mxu0 %v1386
    %2368 = vmatprep.mubr.bf16.mxu0 %v2141
    %2369 = vmatmul.mubr.bf16.gmra.mrb[0].mxu0 %v2140
    %v2370 = vpop.f32.mrb[0].mxu0
    %v2371 = vadd.f32 %v2328, %v2370
    %v2372 = vpop.f32.mrb[0].mxu0
    %v2373 = vadd.f32 %v2330, %v2372
    %v2374 = vpop.f32.mrb[0].mxu0
    %v2375 = vadd.f32 %v2332, %v2374
    %v2376 = vpop.f32.mrb[0].mxu0
    %v2377 = vadd.f32 %v2334, %v2376
    %2378 = vdwg.mxu0
    %2379 = vmatprep.subr.bf16.mxu0 %v1389
    %2380 = vmatpush1.bf16.msra.mxu0 %v1388
    %2381 = vmatprep.subr.bf16.mxu0 %v1391
    %2382 = vmatpush1.bf16.msra.mxu0 %v1390
    %2383 = vmatprep.subr.bf16.mxu0 %v1393
    %2384 = vmatpush1.bf16.msra.mxu0 %v1392
    %2385 = vmatprep.subr.bf16.mxu0 %v1395
    %2386 = vmatpush1.bf16.msra.mxu0 %v1394
    %2387 = vmatprep.subr.bf16.mxu0 %v1397
    %2388 = vmatpush1.bf16.msra.mxu0 %v1396
    %2389 = vmatprep.subr.bf16.mxu0 %v1399
    %2390 = vmatpush1.bf16.msra.mxu0 %v1398
    %2391 = vmatprep.subr.bf16.mxu0 %v1401
    %2392 = vmatpush1.bf16.msra.mxu0 %v1400
    %2393 = vmatprep.subr.bf16.mxu0 %v1403
    %2394 = vmatpush1.bf16.msra.mxu0 %v1402
    %2395 = vmatprep.subr.bf16.mxu0 %v1405
    %2396 = vmatpush1.bf16.msra.mxu0 %v1404
    %2397 = vmatprep.subr.bf16.mxu0 %v1407
    %2398 = vmatpush1.bf16.msra.mxu0 %v1406
    %2399 = vmatprep.subr.bf16.mxu0 %v1409
    %2400 = vmatpush1.bf16.msra.mxu0 %v1408
    %2401 = vmatprep.subr.bf16.mxu0 %v1411
    %2402 = vmatpush1.bf16.msra.mxu0 %v1410
    %2403 = vmatprep.subr.bf16.mxu0 %v1413
    %2404 = vmatpush1.bf16.msra.mxu0 %v1412
    %2405 = vmatprep.subr.bf16.mxu0 %v1415
    %2406 = vmatpush1.bf16.msra.mxu0 %v1414
    %2407 = vmatprep.subr.bf16.mxu0 %v1417
    %2408 = vmatpush1.bf16.msra.mxu0 %v1416
    %2409 = vmatprep.subr.bf16.mxu0 %v1419
    %2410 = vmatpush1.bf16.msra.mxu0 %v1418
    %2411 = vmatprep.mubr.bf16.mxu0 %v2143
    %2412 = vmatmul.mubr.bf16.gmra.mrb[0].mxu0 %v2142
    %v2413 = vpop.f32.mrb[0].mxu0
    %v2414 = vadd.f32 %v2371, %v2413
    %v2415 = vpop.f32.mrb[0].mxu0
    %v2416 = vadd.f32 %v2373, %v2415
    %v2417 = vpop.f32.mrb[0].mxu0
    %v2418 = vadd.f32 %v2375, %v2417
    %v2419 = vpop.f32.mrb[0].mxu0
    %v2420 = vadd.f32 %v2377, %v2419
    %2421 = vdwg.mxu0
    %2422 = vmatprep.subr.bf16.mxu0 %v1421
    %2423 = vmatpush1.bf16.msra.mxu0 %v1420
    %2424 = vmatprep.subr.bf16.mxu0 %v1423
    %2425 = vmatpush1.bf16.msra.mxu0 %v1422
    %2426 = vmatprep.subr.bf16.mxu0 %v1425
    %2427 = vmatpush1.bf16.msra.mxu0 %v1424
    %2428 = vmatprep.subr.bf16.mxu0 %v1427
    %2429 = vmatpush1.bf16.msra.mxu0 %v1426
    %2430 = vmatprep.subr.bf16.mxu0 %v1429
    %2431 = vmatpush1.bf16.msra.mxu0 %v1428
    %2432 = vmatprep.subr.bf16.mxu0 %v1431
    %2433 = vmatpush1.bf16.msra.mxu0 %v1430
    %2434 = vmatprep.subr.bf16.mxu0 %v1433
    %2435 = vmatpush1.bf16.msra.mxu0 %v1432
    %2436 = vmatprep.subr.bf16.mxu0 %v1435
    %2437 = vmatpush1.bf16.msra.mxu0 %v1434
    %2438 = vmatprep.subr.bf16.mxu0 %v1437
    %2439 = vmatpush1.bf16.msra.mxu0 %v1436
    %2440 = vmatprep.subr.bf16.mxu0 %v1439
    %2441 = vmatpush1.bf16.msra.mxu0 %v1438
    %2442 = vmatprep.subr.bf16.mxu0 %v1441
    %2443 = vmatpush1.bf16.msra.mxu0 %v1440
    %2444 = vmatprep.subr.bf16.mxu0 %v1443
    %2445 = vmatpush1.bf16.msra.mxu0 %v1442
    %2446 = vmatprep.subr.bf16.mxu0 %v1445
    %2447 = vmatpush1.bf16.msra.mxu0 %v1444
    %2448 = vmatprep.subr.bf16.mxu0 %v1447
    %2449 = vmatpush1.bf16.msra.mxu0 %v1446
    %2450 = vmatprep.subr.bf16.mxu0 %v1449
    %2451 = vmatpush1.bf16.msra.mxu0 %v1448
    %2452 = vmatprep.subr.bf16.mxu0 %v1451
    %2453 = vmatpush1.bf16.msra.mxu0 %v1450
    %2454 = vmatprep.mubr.bf16.mxu0 %v2145
    %2455 = vmatmul.mubr.bf16.gmra.mrb[0].mxu0 %v2144
    %v2456 = vpop.f32.mrb[0].mxu0
    %v2457 = vadd.f32 %v2414, %v2456
    %v2458 = vpop.f32.mrb[0].mxu0
    %v2459 = vadd.f32 %v2416, %v2458
    %v2460 = vpop.f32.mrb[0].mxu0
    %v2461 = vadd.f32 %v2418, %v2460
    %v2462 = vpop.f32.mrb[0].mxu0
    %v2463 = vadd.f32 %v2420, %v2462
    %2464 = vdwg.mxu0
    %2465 = vmatprep.subr.bf16.mxu0 %v1453
    %2466 = vmatpush1.bf16.msra.mxu0 %v1452
    %2467 = vmatprep.subr.bf16.mxu0 %v1455
    %2468 = vmatpush1.bf16.msra.mxu0 %v1454
    %2469 = vmatprep.subr.bf16.mxu0 %v1457
    %2470 = vmatpush1.bf16.msra.mxu0 %v1456
    %2471 = vmatprep.subr.bf16.mxu0 %v1459
    %2472 = vmatpush1.bf16.msra.mxu0 %v1458
    %2473 = vmatprep.subr.bf16.mxu0 %v1461
    %2474 = vmatpush1.bf16.msra.mxu0 %v1460
    %2475 = vmatprep.subr.bf16.mxu0 %v1463
    %2476 = vmatpush1.bf16.msra.mxu0 %v1462
    %2477 = vmatprep.subr.bf16.mxu0 %v1465
    %2478 = vmatpush1.bf16.msra.mxu0 %v1464
    %2479 = vmatprep.subr.bf16.mxu0 %v1467
    %2480 = vmatpush1.bf16.msra.mxu0 %v1466
    %2481 = vmatprep.subr.bf16.mxu0 %v1469
    %2482 = vmatpush1.bf16.msra.mxu0 %v1468
    %2483 = vmatprep.subr.bf16.mxu0 %v1471
    %2484 = vmatpush1.bf16.msra.mxu0 %v1470
    %2485 = vmatprep.subr.bf16.mxu0 %v1473
    %2486 = vmatpush1.bf16.msra.mxu0 %v1472
    %2487 = vmatprep.subr.bf16.mxu0 %v1475
    %2488 = vmatpush1.bf16.msra.mxu0 %v1474
    %2489 = vmatprep.subr.bf16.mxu0 %v1477
    %2490 = vmatpush1.bf16.msra.mxu0 %v1476
    %2491 = vmatprep.subr.bf16.mxu0 %v1479
    %2492 = vmatpush1.bf16.msra.mxu0 %v1478
    %2493 = vmatprep.subr.bf16.mxu0 %v1481
    %2494 = vmatpush1.bf16.msra.mxu0 %v1480
    %2495 = vmatprep.subr.bf16.mxu0 %v1483
    %2496 = vmatpush1.bf16.msra.mxu0 %v1482
    %2497 = vmatprep.mubr.bf16.mxu0 %v2147
    %2498 = vmatmul.mubr.bf16.gmra.mrb[0].mxu0 %v2146
    %v2499 = vpop.f32.mrb[0].mxu0
    %v2500 = vadd.f32 %v2457, %v2499
    %v2501 = vpop.f32.mrb[0].mxu0
    %v2502 = vadd.f32 %v2459, %v2501
    %v2503 = vpop.f32.mrb[0].mxu0
    %v2504 = vadd.f32 %v2461, %v2503
    %v2505 = vpop.f32.mrb[0].mxu0
    %v2506 = vadd.f32 %v2463, %v2505
    %2507 = vdwg.mxu0
    %v2508 = vmax.f32 %v2076, 0.0
    %v2509 = vmax.f32 %v2078, 0.0
    %v2510 = vmax.f32 %v2080, 0.0
    %v2511 = vmax.f32 %v2082, 0.0
    %v2512 = vmax.f32 %v2500, 0.0
    %v2513 = vmax.f32 %v2502, 0.0
    %v2514 = vmax.f32 %v2504, 0.0
    %v2515 = vmax.f32 %v2506, 0.0
    %v2516 = vpack.c.bf16 %v2510, %v2508
    %v2517 = vpack.c.bf16 %v2511, %v2509
    %v2518 = vpack.c.bf16 %v2514, %v2512
    %v2519 = vpack.c.bf16 %v2515, %v2513
    %v2520 = vld [vmem:[#allocation8] sm:$0xf]
    %v2521 = vld [vmem:[#allocation8 + $0x4] sm:$0xf]
    %v2522 = vld [vmem:[#allocation8 + $0x8] sm:$0xf]
    %v2523 = vld [vmem:[#allocation8 + $0xc] sm:$0xf]
    %v2524 = vld [vmem:[#allocation8 + $0x10] sm:$0xf]
    %v2525 = vld [vmem:[#allocation8 + $0x14] sm:$0xf]
    %v2526 = vld [vmem:[#allocation8 + $0x18] sm:$0xf]
    %v2527 = vld [vmem:[#allocation8 + $0x1c] sm:$0xf]
    %v2528 = vld [vmem:[#allocation8 + $0x20] sm:$0xf]
    %v2529 = vld [vmem:[#allocation8 + $0x24] sm:$0xf]
    %v2530 = vld [vmem:[#allocation8 + $0x28] sm:$0xf]
    %v2531 = vld [vmem:[#allocation8 + $0x2c] sm:$0xf]
    %v2532 = vld [vmem:[#allocation8 + $0x30] sm:$0xf]
    %v2533 = vld [vmem:[#allocation8 + $0x34] sm:$0xf]
    %v2534 = vld [vmem:[#allocation8 + $0x38] sm:$0xf]
    %v2535 = vld [vmem:[#allocation8 + $0x3c] sm:$0xf]
    %v2536 = vld [vmem:[#allocation8 + $0x40] sm:$0xf]
    %v2537 = vld [vmem:[#allocation8 + $0x44] sm:$0xf]
    %v2538 = vld [vmem:[#allocation8 + $0x48] sm:$0xf]
    %v2539 = vld [vmem:[#allocation8 + $0x4c] sm:$0xf]
    %v2540 = vld [vmem:[#allocation8 + $0x50] sm:$0xf]
    %v2541 = vld [vmem:[#allocation8 + $0x54] sm:$0xf]
    %v2542 = vld [vmem:[#allocation8 + $0x58] sm:$0xf]
    %v2543 = vld [vmem:[#allocation8 + $0x5c] sm:$0xf]
    %v2544 = vld [vmem:[#allocation8 + $0x60] sm:$0xf]
    %v2545 = vld [vmem:[#allocation8 + $0x64] sm:$0xf]
    %v2546 = vld [vmem:[#allocation8 + $0x68] sm:$0xf]
    %v2547 = vld [vmem:[#allocation8 + $0x6c] sm:$0xf]
    %v2548 = vld [vmem:[#allocation8 + $0x70] sm:$0xf]
    %v2549 = vld [vmem:[#allocation8 + $0x74] sm:$0xf]
    %v2550 = vld [vmem:[#allocation8 + $0x78] sm:$0xf]
    %v2551 = vld [vmem:[#allocation8 + $0x7c] sm:$0xf]
    %v2552 = vld [vmem:[%s5] sm:$0x1]
    %v2554 = vlaneseq
    %v2555 = vshrl.u32 %v2554, 7
    %v2556 = vsub.s32 0, %v2555
    %v2557 = vrot.slane %v2552, %v2556
    %v2591 = vunpack.c.l.b16 %v2520
    %v2592 = vunpack.c.l.b16 %v2521
    %v2593 = vunpack.c.l.b16 %v2522
    %v2594 = vunpack.c.l.b16 %v2523
    %v2595 = vunpack.c.l.b16 %v2524
    %v2596 = vunpack.c.l.b16 %v2525
    %v2597 = vunpack.c.l.b16 %v2526
    %v2598 = vunpack.c.l.b16 %v2527
    %v2599 = vunpack.c.l.b16 %v2528
    %v2600 = vunpack.c.l.b16 %v2529
    %v2601 = vunpack.c.l.b16 %v2530
    %v2602 = vunpack.c.l.b16 %v2531
    %v2603 = vunpack.c.l.b16 %v2532
    %v2604 = vunpack.c.l.b16 %v2533
    %v2605 = vunpack.c.l.b16 %v2534
    %v2606 = vunpack.c.l.b16 %v2535
    %v2607 = vunpack.c.l.b16 %v2536
    %v2608 = vunpack.c.l.b16 %v2537
    %v2609 = vunpack.c.l.b16 %v2538
    %v2610 = vunpack.c.l.b16 %v2539
    %v2611 = vunpack.c.l.b16 %v2540
    %v2612 = vunpack.c.l.b16 %v2541
    %v2613 = vunpack.c.l.b16 %v2542
    %v2614 = vunpack.c.l.b16 %v2543
    %v2615 = vunpack.c.l.b16 %v2544
    %v2616 = vunpack.c.l.b16 %v2545
    %v2617 = vunpack.c.l.b16 %v2546
    %v2618 = vunpack.c.l.b16 %v2547
    %v2619 = vunpack.c.l.b16 %v2548
    %v2620 = vunpack.c.l.b16 %v2549
    %v2621 = vunpack.c.l.b16 %v2550
    %v2622 = vunpack.c.l.b16 %v2551
    %v2623 = vpack.c.b16 %v2592, %v2591
    %v2624 = vpack.c.b16 %v2594, %v2593
    %v2625 = vpack.c.b16 %v2596, %v2595
    %v2626 = vpack.c.b16 %v2598, %v2597
    %v2627 = vpack.c.b16 %v2600, %v2599
    %v2628 = vpack.c.b16 %v2602, %v2601
    %v2629 = vpack.c.b16 %v2604, %v2603
    %v2630 = vpack.c.b16 %v2606, %v2605
    %v2631 = vpack.c.b16 %v2608, %v2607
    %v2632 = vpack.c.b16 %v2610, %v2609
    %v2633 = vpack.c.b16 %v2612, %v2611
    %v2634 = vpack.c.b16 %v2614, %v2613
    %v2635 = vpack.c.b16 %v2616, %v2615
    %v2636 = vpack.c.b16 %v2618, %v2617
    %v2637 = vpack.c.b16 %v2620, %v2619
    %v2638 = vpack.c.b16 %v2622, %v2621
    %2655 = vmatprep.subr.bf16.mxu0 0
    %2656 = vmatpush1.bf16.msra.mxu0 %v2623
    %2657 = vmatprep.subr.bf16.mxu0 0
    %2658 = vmatpush1.bf16.msra.mxu0 %v2624
    %2659 = vmatprep.subr.bf16.mxu0 0
    %2660 = vmatpush1.bf16.msra.mxu0 %v2625
    %2661 = vmatprep.subr.bf16.mxu0 0
    %2662 = vmatpush1.bf16.msra.mxu0 %v2626
    %2663 = vmatprep.subr.bf16.mxu0 0
    %2664 = vmatpush1.bf16.msra.mxu0 %v2627
    %2665 = vmatprep.subr.bf16.mxu0 0
    %2666 = vmatpush1.bf16.msra.mxu0 %v2628
    %2667 = vmatprep.subr.bf16.mxu0 0
    %2668 = vmatpush1.bf16.msra.mxu0 %v2629
    %2669 = vmatprep.subr.bf16.mxu0 0
    %2670 = vmatpush1.bf16.msra.mxu0 %v2630
    %2671 = vmatprep.subr.bf16.mxu0 0
    %2672 = vmatpush1.bf16.msra.mxu0 %v2631
    %2673 = vmatprep.subr.bf16.mxu0 0
    %2674 = vmatpush1.bf16.msra.mxu0 %v2632
    %2675 = vmatprep.subr.bf16.mxu0 0
    %2676 = vmatpush1.bf16.msra.mxu0 %v2633
    %2677 = vmatprep.subr.bf16.mxu0 0
    %2678 = vmatpush1.bf16.msra.mxu0 %v2634
    %2679 = vmatprep.subr.bf16.mxu0 0
    %2680 = vmatpush1.bf16.msra.mxu0 %v2635
    %2681 = vmatprep.subr.bf16.mxu0 0
    %2682 = vmatpush1.bf16.msra.mxu0 %v2636
    %2683 = vmatprep.subr.bf16.mxu0 0
    %2684 = vmatpush1.bf16.msra.mxu0 %v2637
    %2685 = vmatprep.subr.bf16.mxu0 0
    %2686 = vmatpush1.bf16.msra.mxu0 %v2638
    %2687 = vmatprep.mubr.bf16.mxu0 %v2517
    %2688 = vmatmul.mubr.bf16.gmra.mrb[0].mxu0 %v2516
    %v2689 = vpop.f32.mrb[0].mxu0
    %v2690 = vadd.f32 %v2557, %v2689
    %v2691 = vpop.f32.mrb[0].mxu0
    %v2692 = vpop.f32.mrb[0].mxu0
    %v2693 = vadd.f32 %v2557, %v2692
    %v2694 = vpop.f32.mrb[0].mxu0
    %2695 = vdwg.mxu0
    %2696 = vmatprep.subr.bf16.mxu0 0
    %2697 = vmatpush1.bf16.msra.mxu0 %v2623
    %2698 = vmatprep.subr.bf16.mxu0 0
    %2699 = vmatpush1.bf16.msra.mxu0 %v2624
    %2700 = vmatprep.subr.bf16.mxu0 0
    %2701 = vmatpush1.bf16.msra.mxu0 %v2625
    %2702 = vmatprep.subr.bf16.mxu0 0
    %2703 = vmatpush1.bf16.msra.mxu0 %v2626
    %2704 = vmatprep.subr.bf16.mxu0 0
    %2705 = vmatpush1.bf16.msra.mxu0 %v2627
    %2706 = vmatprep.subr.bf16.mxu0 0
    %2707 = vmatpush1.bf16.msra.mxu0 %v2628
    %2708 = vmatprep.subr.bf16.mxu0 0
    %2709 = vmatpush1.bf16.msra.mxu0 %v2629
    %2710 = vmatprep.subr.bf16.mxu0 0
    %2711 = vmatpush1.bf16.msra.mxu0 %v2630
    %2712 = vmatprep.subr.bf16.mxu0 0
    %2713 = vmatpush1.bf16.msra.mxu0 %v2631
    %2714 = vmatprep.subr.bf16.mxu0 0
    %2715 = vmatpush1.bf16.msra.mxu0 %v2632
    %2716 = vmatprep.subr.bf16.mxu0 0
    %2717 = vmatpush1.bf16.msra.mxu0 %v2633
    %2718 = vmatprep.subr.bf16.mxu0 0
    %2719 = vmatpush1.bf16.msra.mxu0 %v2634
    %2720 = vmatprep.subr.bf16.mxu0 0
    %2721 = vmatpush1.bf16.msra.mxu0 %v2635
    %2722 = vmatprep.subr.bf16.mxu0 0
    %2723 = vmatpush1.bf16.msra.mxu0 %v2636
    %2724 = vmatprep.subr.bf16.mxu0 0
    %2725 = vmatpush1.bf16.msra.mxu0 %v2637
    %2726 = vmatprep.subr.bf16.mxu0 0
    %2727 = vmatpush1.bf16.msra.mxu0 %v2638
    %2728 = vmatprep.mubr.bf16.mxu0 %v2519
    %2729 = vmatmul.mubr.bf16.gmra.mrb[0].mxu0 %v2518
    %v2730 = vpop.f32.mrb[0].mxu0
    %v2731 = vadd.f32 %v2557, %v2730
    %v2732 = vpop.f32.mrb[0].mxu0
    %v2733 = vpop.f32.mrb[0].mxu0
    %v2734 = vadd.f32 %v2557, %v2733
    %v2735 = vpop.f32.mrb[0].mxu0
    %2736 = vdwg.mxu0
    %v2737 = vmax.f32 %v2690, 0.0
    %v2738 = vmax.f32 %v2693, 0.0
    %v2739 = vmax.f32 %v2731, 0.0
    %v2740 = vmax.f32 %v2734, 0.0
    %v2741 = vpack.c.bf16 %v2738, %v2737
    %v2742 = vpack.c.bf16 %v2740, %v2739
    %v2744 = vunpack.c.l.b16 %v2741
    %v2745 = vunpack.c.h.b16 %v2741
    %v2746 = vpack.c.b16 %v2744, %v2744
    %v2747 = vpack.c.b16 %v2745, %v2745
    %2750 = vst [vmem:[#allocation10] sm:$0xf] %v2746
    %2751 = vst [vmem:[#allocation10 + $0x8] sm:$0xf] %v2747
    %v2753 = vunpack.c.l.b16 %v2742
    %v2754 = vunpack.c.h.b16 %v2742
    %v2755 = vpack.c.b16 %v2753, %v2753
    %v2756 = vpack.c.b16 %v2754, %v2754
    %2759 = vst [vmem:[#allocation10 + $0x4] sm:$0xf] %v2755
    %2760 = vst [vmem:[#allocation10 + $0xc] sm:$0xf] %v2756
    // Predicated region
    $region42: #{tpu_custom_call.1} parent=1 // pred_check
      _
    $region43: #{tpu_custom_call.1} parent=1 // pred_check_branch
      %2762 = sbr.rel (0) target = $region45
    $region44: #{tpu_custom_call.1} parent=1 // pred_region
      %s2764 = ssub.s32 256, 256
      %2765 = vsyncadd [#allocation4], %s2764
      %s2766 = sshll.u32 [#allocation10], 4
      %s2767 = int_to_ptr.vmem [resolvable:$true] %s2766
      %2772 = dma.vmem_to_hbm [thread:$0]  %s2767, 256, %s6, [#allocation4], 128, 128, 8
    $region45: #{tpu_custom_call.1} parent=1 // pred_fallthru
      _
    // Predicated region
    $region46: #{tpu_custom_call.1} parent=1 // pred_check
      _
    $region47: #{tpu_custom_call.1} parent=1 // pred_check_branch
      %2774 = sbr.rel (0) target = $region49
    $region48: #{tpu_custom_call.1} parent=1 // pred_region
      %2775 = dma.done [#allocation4], 256
    $region49: #{tpu_custom_call.1} parent=1 // pred_fallthru
      _
    %2776 = vsyncpa [#allocation3], 1
    %2777 = vsyncpa [#allocation6], 1
    %2778 = vsyncpa [#allocation9], 1
    %2779 = vsyncpa [#allocation4], 1

</llo_original>
